<compile_context>
chip_gen: v5e
topology: v5e:2x2
jax: 0.10.0
libtpu: 0.0.40
codegen_flags: <defaults>
</compile_context>

<pallas_src>
import functools

import jax
import jax.numpy as jnp
from jax import lax
from jax.experimental import pallas as pl
from jax.experimental.pallas import tpu as pltpu


# Per-step input payload target: ~4 MiB tiles already sit at ~85% of the HBM
# roofline; bigger tiles buy <1% but eat VMEM (v7x only has 64 MiB).
_TILE_INPUT_BYTES = 4 * 1024 * 1024
# Scoped-VMEM limit bounds handed to Mosaic (floor clears v5e's 16 MiB default).
_VMEM_LIMIT_FLOOR = 24 * 1024 * 1024
_VMEM_LIMIT_CEIL = 48 * 1024 * 1024
# If even a minimal (one sublane-group) full-D tile would exceed this live-VMEM
# bound, switch to the two-pass online-LSE path over D chunks.
_FULL_D_LIVE_BOUND = 32 * 1024 * 1024


def _round_up(n: int, m: int) -> int:
    return ((n + m - 1) // m) * m


def _sublane_multiple(dtype) -> int:
    # Second-to-last BlockSpec dim alignment: 8 for 4-byte, 16 for 2-byte, 32 for 1-byte.
    itemsize = jnp.dtype(dtype).itemsize
    return max(8, 32 // itemsize)


def _num_tensorcores() -> int:
    """2 for v7x-class chips (2 TCs/chip), 1 for v5e/v6e. Conservative fallback: 1."""
    try:
        kind = (getattr(jax.devices()[0], "device_kind", "") or "").lower()
    except Exception:
        return 1
    return 2 if "v7" in kind else 1


def _pick_block_batch(B: int, d_block: int, dtype, ncores: int) -> int:
    """Largest sublane-aligned row tile whose input payload is ~_TILE_INPUT_BYTES."""
    itemsize = jnp.dtype(dtype).itemsize
    sub = _sublane_multiple(dtype)
    bytes_per_row = d_block * itemsize
    bb = _TILE_INPUT_BYTES // max(bytes_per_row, 1)
    bb = max(sub, (bb // sub) * sub)
    bb = min(bb, _round_up(B, sub))
    # Only force a multi-step grid on multi-TensorCore parts (v7x): on 1-TC
    # chips the grid is a serial loop and the extra step is pure overhead.
    if ncores >= 2 and B > sub:
        bb = min(bb, _round_up(pl.cdiv(B, ncores), sub))
    return bb


def _vmem_limit(bb: int, d_block: int, dtype) -> int:
    """Scoped-VMEM limit derived from the actual tile: 2x dbuf in + 2x dbuf out + f32 temps + slack."""
    itemsize = jnp.dtype(dtype).itemsize
    tile_io = bb * d_block * itemsize
    tile_f32 = bb * d_block * 4
    needed = 2 * tile_io + 2 * tile_io + 3 * tile_f32 + (8 << 20)
    return int(min(_VMEM_LIMIT_CEIL, max(_VMEM_LIMIT_FLOOR, needed)))


# -----------------------------------------------------------------------------
# Path 1: full feature dim resident in VMEM (single pass per row tile).
# -----------------------------------------------------------------------------
def _log_softmax_kernel(x_ref, o_ref):
    x = x_ref[...].astype(jnp.float32)
    m = jnp.max(x, axis=-1, keepdims=True)
    lse = jnp.log(jnp.sum(jnp.exp(x - m), axis=-1, keepdims=True))
    # Single broadcasted per-row correction; avoids keeping extra tiles live.
    o_ref[...] = (x - (m + lse)).astype(o_ref.dtype)


def _log_softmax_1pass(x: jax.Array, bb: int) -> jax.Array:
    B, D = x.shape
    return pl.pallas_call(
        _log_softmax_kernel,
        out_shape=jax.ShapeDtypeStruct((B, D), x.dtype),
        grid_spec=pltpu.PrefetchScalarGridSpec(
            num_scalar_prefetch=0,
            grid=(pl.cdiv(B, bb),),
            in_specs=[pl.BlockSpec((bb, D), lambda i: (i, 0))],
            out_specs=pl.BlockSpec((bb, D), lambda i: (i, 0)),
        ),
        compiler_params=pltpu.CompilerParams(
            dimension_semantics=("parallel",),
            vmem_limit_bytes=_vmem_limit(bb, D, x.dtype),
        ),
    )(x)


# -----------------------------------------------------------------------------
# Path 2: D split into chunks, two passes with an online-LSE accumulator.
#   pass 0 (p == 0): running max m and running sum l over D chunks (scratch).
#   pass 1 (p == 1): write x - (m + log(l)) chunk by chunk.
# During pass 0 the output block index is pinned to (i, 0), so no garbage is
# ever written back to HBM and no output block is revisited.
# -----------------------------------------------------------------------------
def _log_softmax_2pass_kernel(x_ref, o_ref, m_sc, l_sc, *, d_total, d_block):
    p = pl.program_id(1)
    j = pl.program_id(2)
    x = x_ref[...].astype(jnp.float32)

    @pl.when(jnp.logical_and(p == 0, j == 0))
    def _():
        m_sc[...] = jnp.full_like(m_sc, -jnp.inf)
        l_sc[...] = jnp.zeros_like(l_sc)

    @pl.when(p == 0)
    def _():
        # Mask OOB columns of a ragged last D chunk to -inf (zero contribution).
        col = j * d_block + lax.broadcasted_iota(jnp.int32, x.shape, 1)
        xm = jnp.where(col < d_total, x, -jnp.inf)
        m_prev = m_sc[...]
        m_new = jnp.maximum(m_prev, jnp.max(xm, axis=-1, keepdims=True))
        # Safe shift so all-(-inf) blocks contribute 0 instead of NaN.
        m_safe = jnp.where(m_new == -jnp.inf, 0.0, m_new)
        scale = jnp.exp(m_prev - m_safe)
        l_sc[...] = l_sc[...] * scale + jnp.sum(
            jnp.exp(xm - m_safe), axis=-1, keepdims=True
        )
        m_sc[...] = m_new

    @pl.when(p == 1)
    def _():
        corr = m_sc[...] + jnp.log(l_sc[...])
        # OOB columns/rows of the tile are dropped on write by Pallas.
        o_ref[...] = (x - corr).astype(o_ref.dtype)


def _log_softmax_2pass(x: jax.Array, bb: int, bd: int) -> jax.Array:
    B, D = x.shape
    nb = pl.cdiv(B, bb)
    nd = pl.cdiv(D, bd)
    kernel = functools.partial(_log_softmax_2pass_kernel, d_total=D, d_block=bd)
    return pl.pallas_call(
        kernel,
        out_shape=jax.ShapeDtypeStruct((B, D), x.dtype),
        grid_spec=pltpu.PrefetchScalarGridSpec(
            num_scalar_prefetch=0,
            grid=(nb, 2, nd),
            in_specs=[pl.BlockSpec((bb, bd), lambda i, p, j: (i, j))],
            out_specs=pl.BlockSpec(
                (bb, bd), lambda i, p, j: (i, jnp.where(p == 0, 0, j))
            ),
            scratch_shapes=[
                pltpu.VMEM((bb, 1), jnp.float32),  # running max m
                pltpu.VMEM((bb, 1), jnp.float32),  # running sum l
            ],
        ),
        compiler_params=pltpu.CompilerParams(
            dimension_semantics=("parallel", "arbitrary", "arbitrary"),
            vmem_limit_bytes=_vmem_limit(bb, bd, x.dtype),
        ),
    )(x)


# -----------------------------------------------------------------------------
# Public wrapper
# -----------------------------------------------------------------------------
def log_softmax(
    x: jax.Array,
    *,
    block_batch: int | None = None,
    block_dim: int | None = None,
) -> jax.Array:
    """LogSoftmax along axis 1 of a 2-D array (batch, dim)."""
    assert x.ndim == 2, "expected (batch, dim)"
    B, D = x.shape
    ncores = _num_tensorcores()
    sub = _sublane_multiple(x.dtype)
    itemsize = jnp.dtype(x.dtype).itemsize

    if block_dim is not None:
        bd = min(D, max(128, _round_up(block_dim, 128)))
    else:
        # Full-D single pass whenever even a minimal (sub-row) tile keeps live
        # VMEM (2x in dbuf + 2x out dbuf + f32 temps) under a conservative bound.
        min_tile_live = sub * D * (4 * itemsize + 3 * 4)
        if min_tile_live <= _FULL_D_LIVE_BOUND:
            bd = D
        else:
            # ~2 MiB input chunk at the minimum row count, lane-aligned.
            bd = max(128, ((2 << 20) // (sub * itemsize)) // 128 * 128)
            bd = min(bd, _round_up(D, 128))

    if block_batch is not None:
        bb = max(sub, _round_up(block_batch, sub))
        bb = min(bb, _round_up(B, sub))
    else:
        bb = _pick_block_batch(B, bd, x.dtype, ncores)

    if bd >= D:
        return _log_softmax_1pass(x, bb)
    return _log_softmax_2pass(x, bb, bd)


if __name__ == "__main__":
    key = jax.random.PRNGKey(0)

    # Shapes consistent with the module: (batch, dim) with dim = 16384.
    B, D = 16, 16384
    x = jax.random.normal(key, (B, D), dtype=jnp.float32)
    ref = jax.nn.log_softmax(x, axis=1)

    # Single-pass (full-D tile) path.
    out = jax.block_until_ready(log_softmax(x))
    assert out.shape == x.shape and out.dtype == x.dtype
    assert jnp.allclose(out, ref, atol=1e-5, rtol=1e-5), "mismatch vs reference"

    # Ragged batch: exercises the cdiv grid / partial tail row tile.
    x2 = jax.random.normal(jax.random.PRNGKey(1), (13, D), dtype=jnp.float32)
    out2 = jax.block_until_ready(log_softmax(x2))
    ref2 = jax.nn.log_softmax(x2, axis=1)
    assert out2.shape == x2.shape
    assert jnp.allclose(out2, ref2, atol=1e-5, rtol=1e-5), "ragged-batch mismatch"

    # Two-pass online-LSE path (forced D split, D divisible by chunk).
    out3 = jax.block_until_ready(log_softmax(x, block_dim=4096))
    assert jnp.allclose(out3, ref, atol=1e-5, rtol=1e-5), "2-pass mismatch"

    # Two-pass with ragged last D chunk (6144 does not divide 16384).
    out4 = jax.block_until_ready(log_softmax(x2, block_dim=6144))
    assert jnp.allclose(out4, ref2, atol=1e-5, rtol=1e-5), "2-pass ragged-D mismatch"

    print("KERNEL_OK")
</pallas_src>

<mosaic_0001>
module attributes {stable_mosaic.version = 11 : i64} {
  func.func @_log_softmax_kernel(%arg0: i32, %arg1: memref<16x16384xf32, #tpu.memory_space<vmem>>, %arg2: memref<16x16384xf32, #tpu.memory_space<vmem>>) attributes {dimension_semantics = [#tpu.dimension_semantics<parallel>], iteration_bounds = array<i64: 1>, scalar_prefetch = 0 : i64, scratch_operands = 0 : i64, tpu.core_type = #tpu.core_type<tc>, window_params = [{transform_indices = @transform_0, window_bounds = array<i64: 16, 16384>}, {transform_indices = @transform_1, window_bounds = array<i64: 16, 16384>}]} {
    %c0 = arith.constant 0 : index
    %c0_0 = arith.constant 0 : index
    %0 = vector.load %arg1[%c0, %c0_0] : memref<16x16384xf32, #tpu.memory_space<vmem>>, vector<16x16384xf32>
    %cst = arith.constant dense<0xFF800000> : vector<16xf32>
    %1 = vector.multi_reduction <maximumf>, %0, %cst [1] : vector<16x16384xf32> to vector<16xf32>
    %2 = vector.shape_cast %1 : vector<16xf32> to vector<16x1xf32>
    %3 = vector.broadcast %2 : vector<16x1xf32> to vector<16x16384xf32>
    %4 = arith.subf %0, %3 : vector<16x16384xf32>
    %5 = math.exp %4 : vector<16x16384xf32>
    %cst_1 = arith.constant dense<0.000000e+00> : vector<16xf32>
    %6 = vector.multi_reduction <add>, %5, %cst_1 [1] : vector<16x16384xf32> to vector<16xf32>
    %7 = vector.shape_cast %6 : vector<16xf32> to vector<16x1xf32>
    %8 = math.log %7 : vector<16x1xf32>
    %9 = arith.addf %2, %8 : vector<16x1xf32>
    %10 = vector.broadcast %9 : vector<16x1xf32> to vector<16x16384xf32>
    %11 = arith.subf %0, %10 : vector<16x16384xf32>
    %c0_2 = arith.constant 0 : index
    %c0_3 = arith.constant 0 : index
    %12 = vector.load %arg2[%c0_2, %c0_3] : memref<16x16384xf32, #tpu.memory_space<vmem>>, vector<16x16384xf32>
    tpu.vector_store %arg2[%c0_2, %c0_3], %11 {strides = array<i32>} : memref<16x16384xf32, #tpu.memory_space<vmem>>, vector<16x16384xf32>,
    return
  }
  func.func @transform_0(%arg0: i32) -> (i32, i32) {
    %c0_i32 = arith.constant 0 : i32
    %c0_i32_0 = arith.constant 0 : i32
    return %arg0, %c0_i32 : i32, i32
  }
  func.func @transform_1(%arg0: i32) -> (i32, i32) {
    %c0_i32 = arith.constant 0 : i32
    %c0_i32_0 = arith.constant 0 : i32
    return %arg0, %c0_i32 : i32, i32
  }
}

</mosaic_0001>

<llo_original>
// kernel: tpu_custom_call.1
$region0: #{tpu_custom_call.1}
  #allocation0 [shape = 'u32[]', space=smem, size = 0x4, offset = 0x4, fixed_abs, tag = 'smem constant byte address 0x4 - core index']
  #allocation1 [shape = 'u32[72,128]{1,0:T(1,128)}', space=vmem, size = 0x9000, scoped, tag = 'internal scratch']
  %s0 = inlined_call_operand.hbm [shape: f32[16,16384], index: 0, kind: input, shape index: {}]
  %s1 = inlined_call_operand.hbm [shape: f32[16,16384], index: 1, kind: output, shape index: {}]
  %s2 = sld [smem:[#allocation0]]
  $region18: #{tpu_custom_call.1} parent=0
    _
  %s4 = ssub.s32 1, %s2
  %s5 = scalar_select 0, %s4, %s2
  $region1: #{tpu_custom_call.1} parent=0
    #allocation2 [shape = 'u8[1048576]{0}', space=vmem, size = 0x100000, scoped, tag = 'input window, operand 0, single buffered']
    #allocation3 [shape = 's32[1]{0}', space=sflag, size = 0x4, scoped, tag = 'scoped memory for tpu_custom_call.1']
    #allocation4 [shape = 's32[1]{0}', space=sflag, size = 0x4, scoped, tag = 'scoped memory for tpu_custom_call.1']
    #allocation5 [shape = 'u8[1048576]{0}', space=vmem, size = 0x100000, scoped, tag = 'output window, operand 0, single buffered']
    %6 = vsyncpa [#allocation3], 0
    %7 = vsyncpa [#allocation4], 0
    // Predicated region
    $region2: #{tpu_custom_call.1} parent=1 // pred_check
      _
    $region3: #{tpu_custom_call.1} parent=1 // pred_check_branch
      %9 = sbr.rel (0) target = $region5
    $region4: #{tpu_custom_call.1} parent=1 // pred_region
      %11 = vsyncadd [#allocation3], 0
      %s12 = sshll.u32 %s0, 4
      %s13 = int_to_ptr.hbm [resolvable:$true] %s12
      %s14 = sshll.u32 [#allocation2], 4
      %s15 = int_to_ptr.vmem [resolvable:$true] %s14
      %20 = dma.hbm_to_vmem [thread:$0]  %s13, 32768, %s15, [#allocation3], 16384, 16384, 1024
    $region5: #{tpu_custom_call.1} parent=1 // pred_fallthru
      _
    // Predicated region
    $region6: #{tpu_custom_call.1} parent=1 // pred_check
      _
    $region7: #{tpu_custom_call.1} parent=1 // pred_check_branch
      %22 = sbr.rel (0) target = $region9
    $region8: #{tpu_custom_call.1} parent=1 // pred_region
      %24 = dma.done [#allocation3], 32768
    $region9: #{tpu_custom_call.1} parent=1 // pred_fallthru
      _
    %v25 = vld [vmem:[#allocation2] sm:$0xff]
    %v26 = vld [vmem:[#allocation2 + $0x8] sm:$0xff]
    %v27 = vld [vmem:[#allocation2 + $0x10] sm:$0xff]
    %v28 = vld [vmem:[#allocation2 + $0x18] sm:$0xff]
    %v29 = vld [vmem:[#allocation2 + $0x20] sm:$0xff]
    %v30 = vld [vmem:[#allocation2 + $0x28] sm:$0xff]
    %v31 = vld [vmem:[#allocation2 + $0x30] sm:$0xff]
    %v32 = vld [vmem:[#allocation2 + $0x38] sm:$0xff]
    %v33 = vld [vmem:[#allocation2 + $0x40] sm:$0xff]
    %v34 = vld [vmem:[#allocation2 + $0x48] sm:$0xff]
    %v35 = vld [vmem:[#allocation2 + $0x50] sm:$0xff]
    %v36 = vld [vmem:[#allocation2 + $0x58] sm:$0xff]
    %v37 = vld [vmem:[#allocation2 + $0x60] sm:$0xff]
    %v38 = vld [vmem:[#allocation2 + $0x68] sm:$0xff]
    %v39 = vld [vmem:[#allocation2 + $0x70] sm:$0xff]
    %v40 = vld [vmem:[#allocation2 + $0x78] sm:$0xff]
    %v41 = vld [vmem:[#allocation2 + $0x80] sm:$0xff]
    %v42 = vld [vmem:[#allocation2 + $0x88] sm:$0xff]
    %v43 = vld [vmem:[#allocation2 + $0x90] sm:$0xff]
    %v44 = vld [vmem:[#allocation2 + $0x98] sm:$0xff]
    %v45 = vld [vmem:[#allocation2 + $0xa0] sm:$0xff]
    %v46 = vld [vmem:[#allocation2 + $0xa8] sm:$0xff]
    %v47 = vld [vmem:[#allocation2 + $0xb0] sm:$0xff]
    %v48 = vld [vmem:[#allocation2 + $0xb8] sm:$0xff]
    %v49 = vld [vmem:[#allocation2 + $0xc0] sm:$0xff]
    %v50 = vld [vmem:[#allocation2 + $0xc8] sm:$0xff]
    %v51 = vld [vmem:[#allocation2 + $0xd0] sm:$0xff]
    %v52 = vld [vmem:[#allocation2 + $0xd8] sm:$0xff]
    %v53 = vld [vmem:[#allocation2 + $0xe0] sm:$0xff]
    %v54 = vld [vmem:[#allocation2 + $0xe8] sm:$0xff]
    %v55 = vld [vmem:[#allocation2 + $0xf0] sm:$0xff]
    %v56 = vld [vmem:[#allocation2 + $0xf8] sm:$0xff]
    %v57 = vld [vmem:[#allocation2 + $0x100] sm:$0xff]
    %v58 = vld [vmem:[#allocation2 + $0x108] sm:$0xff]
    %v59 = vld [vmem:[#allocation2 + $0x110] sm:$0xff]
    %v60 = vld [vmem:[#allocation2 + $0x118] sm:$0xff]
    %v61 = vld [vmem:[#allocation2 + $0x120] sm:$0xff]
    %v62 = vld [vmem:[#allocation2 + $0x128] sm:$0xff]
    %v63 = vld [vmem:[#allocation2 + $0x130] sm:$0xff]
    %v64 = vld [vmem:[#allocation2 + $0x138] sm:$0xff]
    %v65 = vld [vmem:[#allocation2 + $0x140] sm:$0xff]
    %v66 = vld [vmem:[#allocation2 + $0x148] sm:$0xff]
    %v67 = vld [vmem:[#allocation2 + $0x150] sm:$0xff]
    %v68 = vld [vmem:[#allocation2 + $0x158] sm:$0xff]
    %v69 = vld [vmem:[#allocation2 + $0x160] sm:$0xff]
    %v70 = vld [vmem:[#allocation2 + $0x168] sm:$0xff]
    %v71 = vld [vmem:[#allocation2 + $0x170] sm:$0xff]
    %v72 = vld [vmem:[#allocation2 + $0x178] sm:$0xff]
    %v73 = vld [vmem:[#allocation2 + $0x180] sm:$0xff]
    %v74 = vld [vmem:[#allocation2 + $0x188] sm:$0xff]
    %v75 = vld [vmem:[#allocation2 + $0x190] sm:$0xff]
    %v76 = vld [vmem:[#allocation2 + $0x198] sm:$0xff]
    %v77 = vld [vmem:[#allocation2 + $0x1a0] sm:$0xff]
    %v78 = vld [vmem:[#allocation2 + $0x1a8] sm:$0xff]
    %v79 = vld [vmem:[#allocation2 + $0x1b0] sm:$0xff]
    %v80 = vld [vmem:[#allocation2 + $0x1b8] sm:$0xff]
    %v81 = vld [vmem:[#allocation2 + $0x1c0] sm:$0xff]
    %v82 = vld [vmem:[#allocation2 + $0x1c8] sm:$0xff]
    %v83 = vld [vmem:[#allocation2 + $0x1d0] sm:$0xff]
    %v84 = vld [vmem:[#allocation2 + $0x1d8] sm:$0xff]
    %v85 = vld [vmem:[#allocation2 + $0x1e0] sm:$0xff]
    %v86 = vld [vmem:[#allocation2 + $0x1e8] sm:$0xff]
    %v87 = vld [vmem:[#allocation2 + $0x1f0] sm:$0xff]
    %v88 = vld [vmem:[#allocation2 + $0x1f8] sm:$0xff]
    %v89 = vld [vmem:[#allocation2 + $0x200] sm:$0xff]
    %v90 = vld [vmem:[#allocation2 + $0x208] sm:$0xff]
    %v91 = vld [vmem:[#allocation2 + $0x210] sm:$0xff]
    %v92 = vld [vmem:[#allocation2 + $0x218] sm:$0xff]
    %v93 = vld [vmem:[#allocation2 + $0x220] sm:$0xff]
    %v94 = vld [vmem:[#allocation2 + $0x228] sm:$0xff]
    %v95 = vld [vmem:[#allocation2 + $0x230] sm:$0xff]
    %v96 = vld [vmem:[#allocation2 + $0x238] sm:$0xff]
    %v97 = vld [vmem:[#allocation2 + $0x240] sm:$0xff]
    %v98 = vld [vmem:[#allocation2 + $0x248] sm:$0xff]
    %v99 = vld [vmem:[#allocation2 + $0x250] sm:$0xff]
    %v100 = vld [vmem:[#allocation2 + $0x258] sm:$0xff]
    %v101 = vld [vmem:[#allocation2 + $0x260] sm:$0xff]
    %v102 = vld [vmem:[#allocation2 + $0x268] sm:$0xff]
    %v103 = vld [vmem:[#allocation2 + $0x270] sm:$0xff]
    %v104 = vld [vmem:[#allocation2 + $0x278] sm:$0xff]
    %v105 = vld [vmem:[#allocation2 + $0x280] sm:$0xff]
    %v106 = vld [vmem:[#allocation2 + $0x288] sm:$0xff]
    %v107 = vld [vmem:[#allocation2 + $0x290] sm:$0xff]
    %v108 = vld [vmem:[#allocation2 + $0x298] sm:$0xff]
    %v109 = vld [vmem:[#allocation2 + $0x2a0] sm:$0xff]
    %v110 = vld [vmem:[#allocation2 + $0x2a8] sm:$0xff]
    %v111 = vld [vmem:[#allocation2 + $0x2b0] sm:$0xff]
    %v112 = vld [vmem:[#allocation2 + $0x2b8] sm:$0xff]
    %v113 = vld [vmem:[#allocation2 + $0x2c0] sm:$0xff]
    %v114 = vld [vmem:[#allocation2 + $0x2c8] sm:$0xff]
    %v115 = vld [vmem:[#allocation2 + $0x2d0] sm:$0xff]
    %v116 = vld [vmem:[#allocation2 + $0x2d8] sm:$0xff]
    %v117 = vld [vmem:[#allocation2 + $0x2e0] sm:$0xff]
    %v118 = vld [vmem:[#allocation2 + $0x2e8] sm:$0xff]
    %v119 = vld [vmem:[#allocation2 + $0x2f0] sm:$0xff]
    %v120 = vld [vmem:[#allocation2 + $0x2f8] sm:$0xff]
    %v121 = vld [vmem:[#allocation2 + $0x300] sm:$0xff]
    %v122 = vld [vmem:[#allocation2 + $0x308] sm:$0xff]
    %v123 = vld [vmem:[#allocation2 + $0x310] sm:$0xff]
    %v124 = vld [vmem:[#allocation2 + $0x318] sm:$0xff]
    %v125 = vld [vmem:[#allocation2 + $0x320] sm:$0xff]
    %v126 = vld [vmem:[#allocation2 + $0x328] sm:$0xff]
    %v127 = vld [vmem:[#allocation2 + $0x330] sm:$0xff]
    %v128 = vld [vmem:[#allocation2 + $0x338] sm:$0xff]
    %v129 = vld [vmem:[#allocation2 + $0x340] sm:$0xff]
    %v130 = vld [vmem:[#allocation2 + $0x348] sm:$0xff]
    %v131 = vld [vmem:[#allocation2 + $0x350] sm:$0xff]
    %v132 = vld [vmem:[#allocation2 + $0x358] sm:$0xff]
    %v133 = vld [vmem:[#allocation2 + $0x360] sm:$0xff]
    %v134 = vld [vmem:[#allocation2 + $0x368] sm:$0xff]
    %v135 = vld [vmem:[#allocation2 + $0x370] sm:$0xff]
    %v136 = vld [vmem:[#allocation2 + $0x378] sm:$0xff]
    %v137 = vld [vmem:[#allocation2 + $0x380] sm:$0xff]
    %v138 = vld [vmem:[#allocation2 + $0x388] sm:$0xff]
    %v139 = vld [vmem:[#allocation2 + $0x390] sm:$0xff]
    %v140 = vld [vmem:[#allocation2 + $0x398] sm:$0xff]
    %v141 = vld [vmem:[#allocation2 + $0x3a0] sm:$0xff]
    %v142 = vld [vmem:[#allocation2 + $0x3a8] sm:$0xff]
    %v143 = vld [vmem:[#allocation2 + $0x3b0] sm:$0xff]
    %v144 = vld [vmem:[#allocation2 + $0x3b8] sm:$0xff]
    %v145 = vld [vmem:[#allocation2 + $0x3c0] sm:$0xff]
    %v146 = vld [vmem:[#allocation2 + $0x3c8] sm:$0xff]
    %v147 = vld [vmem:[#allocation2 + $0x3d0] sm:$0xff]
    %v148 = vld [vmem:[#allocation2 + $0x3d8] sm:$0xff]
    %v149 = vld [vmem:[#allocation2 + $0x3e0] sm:$0xff]
    %v150 = vld [vmem:[#allocation2 + $0x3e8] sm:$0xff]
    %v151 = vld [vmem:[#allocation2 + $0x3f0] sm:$0xff]
    %v152 = vld [vmem:[#allocation2 + $0x3f8] sm:$0xff]
    %v153 = vld [vmem:[#allocation2 + $0x400] sm:$0xff]
    %v154 = vld [vmem:[#allocation2 + $0x408] sm:$0xff]
    %v155 = vld [vmem:[#allocation2 + $0x410] sm:$0xff]
    %v156 = vld [vmem:[#allocation2 + $0x418] sm:$0xff]
    %v157 = vld [vmem:[#allocation2 + $0x420] sm:$0xff]
    %v158 = vld [vmem:[#allocation2 + $0x428] sm:$0xff]
    %v159 = vld [vmem:[#allocation2 + $0x430] sm:$0xff]
    %v160 = vld [vmem:[#allocation2 + $0x438] sm:$0xff]
    %v161 = vld [vmem:[#allocation2 + $0x440] sm:$0xff]
    %v162 = vld [vmem:[#allocation2 + $0x448] sm:$0xff]
    %v163 = vld [vmem:[#allocation2 + $0x450] sm:$0xff]
    %v164 = vld [vmem:[#allocation2 + $0x458] sm:$0xff]
    %v165 = vld [vmem:[#allocation2 + $0x460] sm:$0xff]
    %v166 = vld [vmem:[#allocation2 + $0x468] sm:$0xff]
    %v167 = vld [vmem:[#allocation2 + $0x470] sm:$0xff]
    %v168 = vld [vmem:[#allocation2 + $0x478] sm:$0xff]
    %v169 = vld [vmem:[#allocation2 + $0x480] sm:$0xff]
    %v170 = vld [vmem:[#allocation2 + $0x488] sm:$0xff]
    %v171 = vld [vmem:[#allocation2 + $0x490] sm:$0xff]
    %v172 = vld [vmem:[#allocation2 + $0x498] sm:$0xff]
    %v173 = vld [vmem:[#allocation2 + $0x4a0] sm:$0xff]
    %v174 = vld [vmem:[#allocation2 + $0x4a8] sm:$0xff]
    %v175 = vld [vmem:[#allocation2 + $0x4b0] sm:$0xff]
    %v176 = vld [vmem:[#allocation2 + $0x4b8] sm:$0xff]
    %v177 = vld [vmem:[#allocation2 + $0x4c0] sm:$0xff]
    %v178 = vld [vmem:[#allocation2 + $0x4c8] sm:$0xff]
    %v179 = vld [vmem:[#allocation2 + $0x4d0] sm:$0xff]
    %v180 = vld [vmem:[#allocation2 + $0x4d8] sm:$0xff]
    %v181 = vld [vmem:[#allocation2 + $0x4e0] sm:$0xff]
    %v182 = vld [vmem:[#allocation2 + $0x4e8] sm:$0xff]
    %v183 = vld [vmem:[#allocation2 + $0x4f0] sm:$0xff]
    %v184 = vld [vmem:[#allocation2 + $0x4f8] sm:$0xff]
    %v185 = vld [vmem:[#allocation2 + $0x500] sm:$0xff]
    %v186 = vld [vmem:[#allocation2 + $0x508] sm:$0xff]
    %v187 = vld [vmem:[#allocation2 + $0x510] sm:$0xff]
    %v188 = vld [vmem:[#allocation2 + $0x518] sm:$0xff]
    %v189 = vld [vmem:[#allocation2 + $0x520] sm:$0xff]
    %v190 = vld [vmem:[#allocation2 + $0x528] sm:$0xff]
    %v191 = vld [vmem:[#allocation2 + $0x530] sm:$0xff]
    %v192 = vld [vmem:[#allocation2 + $0x538] sm:$0xff]
    %v193 = vld [vmem:[#allocation2 + $0x540] sm:$0xff]
    %v194 = vld [vmem:[#allocation2 + $0x548] sm:$0xff]
    %v195 = vld [vmem:[#allocation2 + $0x550] sm:$0xff]
    %v196 = vld [vmem:[#allocation2 + $0x558] sm:$0xff]
    %v197 = vld [vmem:[#allocation2 + $0x560] sm:$0xff]
    %v198 = vld [vmem:[#allocation2 + $0x568] sm:$0xff]
    %v199 = vld [vmem:[#allocation2 + $0x570] sm:$0xff]
    %v200 = vld [vmem:[#allocation2 + $0x578] sm:$0xff]
    %v201 = vld [vmem:[#allocation2 + $0x580] sm:$0xff]
    %v202 = vld [vmem:[#allocation2 + $0x588] sm:$0xff]
    %v203 = vld [vmem:[#allocation2 + $0x590] sm:$0xff]
    %v204 = vld [vmem:[#allocation2 + $0x598] sm:$0xff]
    %v205 = vld [vmem:[#allocation2 + $0x5a0] sm:$0xff]
    %v206 = vld [vmem:[#allocation2 + $0x5a8] sm:$0xff]
    %v207 = vld [vmem:[#allocation2 + $0x5b0] sm:$0xff]
    %v208 = vld [vmem:[#allocation2 + $0x5b8] sm:$0xff]
    %v209 = vld [vmem:[#allocation2 + $0x5c0] sm:$0xff]
    %v210 = vld [vmem:[#allocation2 + $0x5c8] sm:$0xff]
    %v211 = vld [vmem:[#allocation2 + $0x5d0] sm:$0xff]
    %v212 = vld [vmem:[#allocation2 + $0x5d8] sm:$0xff]
    %v213 = vld [vmem:[#allocation2 + $0x5e0] sm:$0xff]
    %v214 = vld [vmem:[#allocation2 + $0x5e8] sm:$0xff]
    %v215 = vld [vmem:[#allocation2 + $0x5f0] sm:$0xff]
    %v216 = vld [vmem:[#allocation2 + $0x5f8] sm:$0xff]
    %v217 = vld [vmem:[#allocation2 + $0x600] sm:$0xff]
    %v218 = vld [vmem:[#allocation2 + $0x608] sm:$0xff]
    %v219 = vld [vmem:[#allocation2 + $0x610] sm:$0xff]
    %v220 = vld [vmem:[#allocation2 + $0x618] sm:$0xff]
    %v221 = vld [vmem:[#allocation2 + $0x620] sm:$0xff]
    %v222 = vld [vmem:[#allocation2 + $0x628] sm:$0xff]
    %v223 = vld [vmem:[#allocation2 + $0x630] sm:$0xff]
    %v224 = vld [vmem:[#allocation2 + $0x638] sm:$0xff]
    %v225 = vld [vmem:[#allocation2 + $0x640] sm:$0xff]
    %v226 = vld [vmem:[#allocation2 + $0x648] sm:$0xff]
    %v227 = vld [vmem:[#allocation2 + $0x650] sm:$0xff]
    %v228 = vld [vmem:[#allocation2 + $0x658] sm:$0xff]
    %v229 = vld [vmem:[#allocation2 + $0x660] sm:$0xff]
    %v230 = vld [vmem:[#allocation2 + $0x668] sm:$0xff]
    %v231 = vld [vmem:[#allocation2 + $0x670] sm:$0xff]
    %v232 = vld [vmem:[#allocation2 + $0x678] sm:$0xff]
    %v233 = vld [vmem:[#allocation2 + $0x680] sm:$0xff]
    %v234 = vld [vmem:[#allocation2 + $0x688] sm:$0xff]
    %v235 = vld [vmem:[#allocation2 + $0x690] sm:$0xff]
    %v236 = vld [vmem:[#allocation2 + $0x698] sm:$0xff]
    %v237 = vld [vmem:[#allocation2 + $0x6a0] sm:$0xff]
    %v238 = vld [vmem:[#allocation2 + $0x6a8] sm:$0xff]
    %v239 = vld [vmem:[#allocation2 + $0x6b0] sm:$0xff]
    %v240 = vld [vmem:[#allocation2 + $0x6b8] sm:$0xff]
    %v241 = vld [vmem:[#allocation2 + $0x6c0] sm:$0xff]
    %v242 = vld [vmem:[#allocation2 + $0x6c8] sm:$0xff]
    %v243 = vld [vmem:[#allocation2 + $0x6d0] sm:$0xff]
    %v244 = vld [vmem:[#allocation2 + $0x6d8] sm:$0xff]
    %v245 = vld [vmem:[#allocation2 + $0x6e0] sm:$0xff]
    %v246 = vld [vmem:[#allocation2 + $0x6e8] sm:$0xff]
    %v247 = vld [vmem:[#allocation2 + $0x6f0] sm:$0xff]
    %v248 = vld [vmem:[#allocation2 + $0x6f8] sm:$0xff]
    %v249 = vld [vmem:[#allocation2 + $0x700] sm:$0xff]
    %v250 = vld [vmem:[#allocation2 + $0x708] sm:$0xff]
    %v251 = vld [vmem:[#allocation2 + $0x710] sm:$0xff]
    %v252 = vld [vmem:[#allocation2 + $0x718] sm:$0xff]
    %v253 = vld [vmem:[#allocation2 + $0x720] sm:$0xff]
    %v254 = vld [vmem:[#allocation2 + $0x728] sm:$0xff]
    %v255 = vld [vmem:[#allocation2 + $0x730] sm:$0xff]
    %v256 = vld [vmem:[#allocation2 + $0x738] sm:$0xff]
    %v257 = vld [vmem:[#allocation2 + $0x740] sm:$0xff]
    %v258 = vld [vmem:[#allocation2 + $0x748] sm:$0xff]
    %v259 = vld [vmem:[#allocation2 + $0x750] sm:$0xff]
    %v260 = vld [vmem:[#allocation2 + $0x758] sm:$0xff]
    %v261 = vld [vmem:[#allocation2 + $0x760] sm:$0xff]
    %v262 = vld [vmem:[#allocation2 + $0x768] sm:$0xff]
    %v263 = vld [vmem:[#allocation2 + $0x770] sm:$0xff]
    %v264 = vld [vmem:[#allocation2 + $0x778] sm:$0xff]
    %v265 = vld [vmem:[#allocation2 + $0x780] sm:$0xff]
    %v266 = vld [vmem:[#allocation2 + $0x788] sm:$0xff]
    %v267 = vld [vmem:[#allocation2 + $0x790] sm:$0xff]
    %v268 = vld [vmem:[#allocation2 + $0x798] sm:$0xff]
    %v269 = vld [vmem:[#allocation2 + $0x7a0] sm:$0xff]
    %v270 = vld [vmem:[#allocation2 + $0x7a8] sm:$0xff]
    %v271 = vld [vmem:[#allocation2 + $0x7b0] sm:$0xff]
    %v272 = vld [vmem:[#allocation2 + $0x7b8] sm:$0xff]
    %v273 = vld [vmem:[#allocation2 + $0x7c0] sm:$0xff]
    %v274 = vld [vmem:[#allocation2 + $0x7c8] sm:$0xff]
    %v275 = vld [vmem:[#allocation2 + $0x7d0] sm:$0xff]
    %v276 = vld [vmem:[#allocation2 + $0x7d8] sm:$0xff]
    %v277 = vld [vmem:[#allocation2 + $0x7e0] sm:$0xff]
    %v278 = vld [vmem:[#allocation2 + $0x7e8] sm:$0xff]
    %v279 = vld [vmem:[#allocation2 + $0x7f0] sm:$0xff]
    %v280 = vld [vmem:[#allocation2 + $0x7f8] sm:$0xff]
    %v281 = vmax.f32 %v25, %v27
    %v282 = vmax.f32 %v26, %v28
    %v283 = vmax.f32 %v281, %v29
    %v284 = vmax.f32 %v282, %v30
    %v285 = vmax.f32 %v283, %v31
    %v286 = vmax.f32 %v284, %v32
    %v287 = vmax.f32 %v285, %v33
    %v288 = vmax.f32 %v286, %v34
    %v289 = vmax.f32 %v287, %v35
    %v290 = vmax.f32 %v288, %v36
    %v291 = vmax.f32 %v289, %v37
    %v292 = vmax.f32 %v290, %v38
    %v293 = vmax.f32 %v291, %v39
    %v294 = vmax.f32 %v292, %v40
    %v295 = vmax.f32 %v293, %v41
    %v296 = vmax.f32 %v294, %v42
    %v297 = vmax.f32 %v295, %v43
    %v298 = vmax.f32 %v296, %v44
    %v299 = vmax.f32 %v297, %v45
    %v300 = vmax.f32 %v298, %v46
    %v301 = vmax.f32 %v299, %v47
    %v302 = vmax.f32 %v300, %v48
    %v303 = vmax.f32 %v301, %v49
    %v304 = vmax.f32 %v302, %v50
    %v305 = vmax.f32 %v303, %v51
    %v306 = vmax.f32 %v304, %v52
    %v307 = vmax.f32 %v305, %v53
    %v308 = vmax.f32 %v306, %v54
    %v309 = vmax.f32 %v307, %v55
    %v310 = vmax.f32 %v308, %v56
    %v311 = vmax.f32 %v309, %v57
    %v312 = vmax.f32 %v310, %v58
    %v313 = vmax.f32 %v311, %v59
    %v314 = vmax.f32 %v312, %v60
    %v315 = vmax.f32 %v313, %v61
    %v316 = vmax.f32 %v314, %v62
    %v317 = vmax.f32 %v315, %v63
    %v318 = vmax.f32 %v316, %v64
    %v319 = vmax.f32 %v317, %v65
    %v320 = vmax.f32 %v318, %v66
    %v321 = vmax.f32 %v319, %v67
    %v322 = vmax.f32 %v320, %v68
    %v323 = vmax.f32 %v321, %v69
    %v324 = vmax.f32 %v322, %v70
    %v325 = vmax.f32 %v323, %v71
    %v326 = vmax.f32 %v324, %v72
    %v327 = vmax.f32 %v325, %v73
    %v328 = vmax.f32 %v326, %v74
    %v329 = vmax.f32 %v327, %v75
    %v330 = vmax.f32 %v328, %v76
    %v331 = vmax.f32 %v329, %v77
    %v332 = vmax.f32 %v330, %v78
    %v333 = vmax.f32 %v331, %v79
    %v334 = vmax.f32 %v332, %v80
    %v335 = vmax.f32 %v333, %v81
    %v336 = vmax.f32 %v334, %v82
    %v337 = vmax.f32 %v335, %v83
    %v338 = vmax.f32 %v336, %v84
    %v339 = vmax.f32 %v337, %v85
    %v340 = vmax.f32 %v338, %v86
    %v341 = vmax.f32 %v339, %v87
    %v342 = vmax.f32 %v340, %v88
    %v343 = vmax.f32 %v341, %v89
    %v344 = vmax.f32 %v342, %v90
    %v345 = vmax.f32 %v343, %v91
    %v346 = vmax.f32 %v344, %v92
    %v347 = vmax.f32 %v345, %v93
    %v348 = vmax.f32 %v346, %v94
    %v349 = vmax.f32 %v347, %v95
    %v350 = vmax.f32 %v348, %v96
    %v351 = vmax.f32 %v349, %v97
    %v352 = vmax.f32 %v350, %v98
    %v353 = vmax.f32 %v351, %v99
    %v354 = vmax.f32 %v352, %v100
    %v355 = vmax.f32 %v353, %v101
    %v356 = vmax.f32 %v354, %v102
    %v357 = vmax.f32 %v355, %v103
    %v358 = vmax.f32 %v356, %v104
    %v359 = vmax.f32 %v357, %v105
    %v360 = vmax.f32 %v358, %v106
    %v361 = vmax.f32 %v359, %v107
    %v362 = vmax.f32 %v360, %v108
    %v363 = vmax.f32 %v361, %v109
    %v364 = vmax.f32 %v362, %v110
    %v365 = vmax.f32 %v363, %v111
    %v366 = vmax.f32 %v364, %v112
    %v367 = vmax.f32 %v365, %v113
    %v368 = vmax.f32 %v366, %v114
    %v369 = vmax.f32 %v367, %v115
    %v370 = vmax.f32 %v368, %v116
    %v371 = vmax.f32 %v369, %v117
    %v372 = vmax.f32 %v370, %v118
    %v373 = vmax.f32 %v371, %v119
    %v374 = vmax.f32 %v372, %v120
    %v375 = vmax.f32 %v373, %v121
    %v376 = vmax.f32 %v374, %v122
    %v377 = vmax.f32 %v375, %v123
    %v378 = vmax.f32 %v376, %v124
    %v379 = vmax.f32 %v377, %v125
    %v380 = vmax.f32 %v378, %v126
    %v381 = vmax.f32 %v379, %v127
    %v382 = vmax.f32 %v380, %v128
    %v383 = vmax.f32 %v381, %v129
    %v384 = vmax.f32 %v382, %v130
    %v385 = vmax.f32 %v383, %v131
    %v386 = vmax.f32 %v384, %v132
    %v387 = vmax.f32 %v385, %v133
    %v388 = vmax.f32 %v386, %v134
    %v389 = vmax.f32 %v387, %v135
    %v390 = vmax.f32 %v388, %v136
    %v391 = vmax.f32 %v389, %v137
    %v392 = vmax.f32 %v390, %v138
    %v393 = vmax.f32 %v391, %v139
    %v394 = vmax.f32 %v392, %v140
    %v395 = vmax.f32 %v393, %v141
    %v396 = vmax.f32 %v394, %v142
    %v397 = vmax.f32 %v395, %v143
    %v398 = vmax.f32 %v396, %v144
    %v399 = vmax.f32 %v397, %v145
    %v400 = vmax.f32 %v398, %v146
    %v401 = vmax.f32 %v399, %v147
    %v402 = vmax.f32 %v400, %v148
    %v403 = vmax.f32 %v401, %v149
    %v404 = vmax.f32 %v402, %v150
    %v405 = vmax.f32 %v403, %v151
    %v406 = vmax.f32 %v404, %v152
    %v407 = vmax.f32 %v405, %v406
    %408 = vmax.xlane.f32.xlu0 %v407
    %v409 = vpop.xlane.xlu0 %408
    %v410 = vmax.f32 %v153, %v155
    %v411 = vmax.f32 %v154, %v156
    %v412 = vmax.f32 %v410, %v157
    %v413 = vmax.f32 %v411, %v158
    %v414 = vmax.f32 %v412, %v159
    %v415 = vmax.f32 %v413, %v160
    %v416 = vmax.f32 %v414, %v161
    %v417 = vmax.f32 %v415, %v162
    %v418 = vmax.f32 %v416, %v163
    %v419 = vmax.f32 %v417, %v164
    %v420 = vmax.f32 %v418, %v165
    %v421 = vmax.f32 %v419, %v166
    %v422 = vmax.f32 %v420, %v167
    %v423 = vmax.f32 %v421, %v168
    %v424 = vmax.f32 %v422, %v169
    %v425 = vmax.f32 %v423, %v170
    %v426 = vmax.f32 %v424, %v171
    %v427 = vmax.f32 %v425, %v172
    %v428 = vmax.f32 %v426, %v173
    %v429 = vmax.f32 %v427, %v174
    %v430 = vmax.f32 %v428, %v175
    %v431 = vmax.f32 %v429, %v176
    %v432 = vmax.f32 %v430, %v177
    %v433 = vmax.f32 %v431, %v178
    %v434 = vmax.f32 %v432, %v179
    %v435 = vmax.f32 %v433, %v180
    %v436 = vmax.f32 %v434, %v181
    %v437 = vmax.f32 %v435, %v182
    %v438 = vmax.f32 %v436, %v183
    %v439 = vmax.f32 %v437, %v184
    %v440 = vmax.f32 %v438, %v185
    %v441 = vmax.f32 %v439, %v186
    %v442 = vmax.f32 %v440, %v187
    %v443 = vmax.f32 %v441, %v188
    %v444 = vmax.f32 %v442, %v189
    %v445 = vmax.f32 %v443, %v190
    %v446 = vmax.f32 %v444, %v191
    %v447 = vmax.f32 %v445, %v192
    %v448 = vmax.f32 %v446, %v193
    %v449 = vmax.f32 %v447, %v194
    %v450 = vmax.f32 %v448, %v195
    %v451 = vmax.f32 %v449, %v196
    %v452 = vmax.f32 %v450, %v197
    %v453 = vmax.f32 %v451, %v198
    %v454 = vmax.f32 %v452, %v199
    %v455 = vmax.f32 %v453, %v200
    %v456 = vmax.f32 %v454, %v201
    %v457 = vmax.f32 %v455, %v202
    %v458 = vmax.f32 %v456, %v203
    %v459 = vmax.f32 %v457, %v204
    %v460 = vmax.f32 %v458, %v205
    %v461 = vmax.f32 %v459, %v206
    %v462 = vmax.f32 %v460, %v207
    %v463 = vmax.f32 %v461, %v208
    %v464 = vmax.f32 %v462, %v209
    %v465 = vmax.f32 %v463, %v210
    %v466 = vmax.f32 %v464, %v211
    %v467 = vmax.f32 %v465, %v212
    %v468 = vmax.f32 %v466, %v213
    %v469 = vmax.f32 %v467, %v214
    %v470 = vmax.f32 %v468, %v215
    %v471 = vmax.f32 %v469, %v216
    %v472 = vmax.f32 %v470, %v217
    %v473 = vmax.f32 %v471, %v218
    %v474 = vmax.f32 %v472, %v219
    %v475 = vmax.f32 %v473, %v220
    %v476 = vmax.f32 %v474, %v221
    %v477 = vmax.f32 %v475, %v222
    %v478 = vmax.f32 %v476, %v223
    %v479 = vmax.f32 %v477, %v224
    %v480 = vmax.f32 %v478, %v225
    %v481 = vmax.f32 %v479, %v226
    %v482 = vmax.f32 %v480, %v227
    %v483 = vmax.f32 %v481, %v228
    %v484 = vmax.f32 %v482, %v229
    %v485 = vmax.f32 %v483, %v230
    %v486 = vmax.f32 %v484, %v231
    %v487 = vmax.f32 %v485, %v232
    %v488 = vmax.f32 %v486, %v233
    %v489 = vmax.f32 %v487, %v234
    %v490 = vmax.f32 %v488, %v235
    %v491 = vmax.f32 %v489, %v236
    %v492 = vmax.f32 %v490, %v237
    %v493 = vmax.f32 %v491, %v238
    %v494 = vmax.f32 %v492, %v239
    %v495 = vmax.f32 %v493, %v240
    %v496 = vmax.f32 %v494, %v241
    %v497 = vmax.f32 %v495, %v242
    %v498 = vmax.f32 %v496, %v243
    %v499 = vmax.f32 %v497, %v244
    %v500 = vmax.f32 %v498, %v245
    %v501 = vmax.f32 %v499, %v246
    %v502 = vmax.f32 %v500, %v247
    %v503 = vmax.f32 %v501, %v248
    %v504 = vmax.f32 %v502, %v249
    %v505 = vmax.f32 %v503, %v250
    %v506 = vmax.f32 %v504, %v251
    %v507 = vmax.f32 %v505, %v252
    %v508 = vmax.f32 %v506, %v253
    %v509 = vmax.f32 %v507, %v254
    %v510 = vmax.f32 %v508, %v255
    %v511 = vmax.f32 %v509, %v256
    %v512 = vmax.f32 %v510, %v257
    %v513 = vmax.f32 %v511, %v258
    %v514 = vmax.f32 %v512, %v259
    %v515 = vmax.f32 %v513, %v260
    %v516 = vmax.f32 %v514, %v261
    %v517 = vmax.f32 %v515, %v262
    %v518 = vmax.f32 %v516, %v263
    %v519 = vmax.f32 %v517, %v264
    %v520 = vmax.f32 %v518, %v265
    %v521 = vmax.f32 %v519, %v266
    %v522 = vmax.f32 %v520, %v267
    %v523 = vmax.f32 %v521, %v268
    %v524 = vmax.f32 %v522, %v269
    %v525 = vmax.f32 %v523, %v270
    %v526 = vmax.f32 %v524, %v271
    %v527 = vmax.f32 %v525, %v272
    %v528 = vmax.f32 %v526, %v273
    %v529 = vmax.f32 %v527, %v274
    %v530 = vmax.f32 %v528, %v275
    %v531 = vmax.f32 %v529, %v276
    %v532 = vmax.f32 %v530, %v277
    %v533 = vmax.f32 %v531, %v278
    %v534 = vmax.f32 %v532, %v279
    %v535 = vmax.f32 %v533, %v280
    %v536 = vmax.f32 %v534, %v535
    %537 = vmax.xlane.f32.xlu0 %v536
    %v538 = vpop.xlane.xlu0 %537
    %v539 = vsub.f32 %v25, %v409
    %v540 = vsub.f32 %v26, %v409
    %v541 = vsub.f32 %v27, %v409
    %v542 = vsub.f32 %v28, %v409
    %v543 = vsub.f32 %v29, %v409
    %v544 = vsub.f32 %v30, %v409
    %v545 = vsub.f32 %v31, %v409
    %v546 = vsub.f32 %v32, %v409
    %v547 = vsub.f32 %v33, %v409
    %v548 = vsub.f32 %v34, %v409
    %v549 = vsub.f32 %v35, %v409
    %v550 = vsub.f32 %v36, %v409
    %v551 = vsub.f32 %v37, %v409
    %v552 = vsub.f32 %v38, %v409
    %v553 = vsub.f32 %v39, %v409
    %v554 = vsub.f32 %v40, %v409
    %v555 = vsub.f32 %v41, %v409
    %v556 = vsub.f32 %v42, %v409
    %v557 = vsub.f32 %v43, %v409
    %v558 = vsub.f32 %v44, %v409
    %v559 = vsub.f32 %v45, %v409
    %v560 = vsub.f32 %v46, %v409
    %v561 = vsub.f32 %v47, %v409
    %v562 = vsub.f32 %v48, %v409
    %v563 = vsub.f32 %v49, %v409
    %v564 = vsub.f32 %v50, %v409
    %v565 = vsub.f32 %v51, %v409
    %v566 = vsub.f32 %v52, %v409
    %v567 = vsub.f32 %v53, %v409
    %v568 = vsub.f32 %v54, %v409
    %v569 = vsub.f32 %v55, %v409
    %v570 = vsub.f32 %v56, %v409
    %v571 = vsub.f32 %v57, %v409
    %v572 = vsub.f32 %v58, %v409
    %v573 = vsub.f32 %v59, %v409
    %v574 = vsub.f32 %v60, %v409
    %v575 = vsub.f32 %v61, %v409
    %v576 = vsub.f32 %v62, %v409
    %v577 = vsub.f32 %v63, %v409
    %v578 = vsub.f32 %v64, %v409
    %v579 = vsub.f32 %v65, %v409
    %v580 = vsub.f32 %v66, %v409
    %v581 = vsub.f32 %v67, %v409
    %v582 = vsub.f32 %v68, %v409
    %v583 = vsub.f32 %v69, %v409
    %v584 = vsub.f32 %v70, %v409
    %v585 = vsub.f32 %v71, %v409
    %v586 = vsub.f32 %v72, %v409
    %v587 = vsub.f32 %v73, %v409
    %v588 = vsub.f32 %v74, %v409
    %v589 = vsub.f32 %v75, %v409
    %v590 = vsub.f32 %v76, %v409
    %v591 = vsub.f32 %v77, %v409
    %v592 = vsub.f32 %v78, %v409
    %v593 = vsub.f32 %v79, %v409
    %v594 = vsub.f32 %v80, %v409
    %v595 = vsub.f32 %v81, %v409
    %v596 = vsub.f32 %v82, %v409
    %v597 = vsub.f32 %v83, %v409
    %v598 = vsub.f32 %v84, %v409
    %v599 = vsub.f32 %v85, %v409
    %v600 = vsub.f32 %v86, %v409
    %v601 = vsub.f32 %v87, %v409
    %v602 = vsub.f32 %v88, %v409
    %v603 = vsub.f32 %v89, %v409
    %v604 = vsub.f32 %v90, %v409
    %v605 = vsub.f32 %v91, %v409
    %v606 = vsub.f32 %v92, %v409
    %v607 = vsub.f32 %v93, %v409
    %v608 = vsub.f32 %v94, %v409
    %v609 = vsub.f32 %v95, %v409
    %v610 = vsub.f32 %v96, %v409
    %v611 = vsub.f32 %v97, %v409
    %v612 = vsub.f32 %v98, %v409
    %v613 = vsub.f32 %v99, %v409
    %v614 = vsub.f32 %v100, %v409
    %v615 = vsub.f32 %v101, %v409
    %v616 = vsub.f32 %v102, %v409
    %v617 = vsub.f32 %v103, %v409
    %v618 = vsub.f32 %v104, %v409
    %v619 = vsub.f32 %v105, %v409
    %v620 = vsub.f32 %v106, %v409
    %v621 = vsub.f32 %v107, %v409
    %v622 = vsub.f32 %v108, %v409
    %v623 = vsub.f32 %v109, %v409
    %v624 = vsub.f32 %v110, %v409
    %v625 = vsub.f32 %v111, %v409
    %v626 = vsub.f32 %v112, %v409
    %v627 = vsub.f32 %v113, %v409
    %v628 = vsub.f32 %v114, %v409
    %v629 = vsub.f32 %v115, %v409
    %v630 = vsub.f32 %v116, %v409
    %v631 = vsub.f32 %v117, %v409
    %v632 = vsub.f32 %v118, %v409
    %v633 = vsub.f32 %v119, %v409
    %v634 = vsub.f32 %v120, %v409
    %v635 = vsub.f32 %v121, %v409
    %v636 = vsub.f32 %v122, %v409
    %v637 = vsub.f32 %v123, %v409
    %v638 = vsub.f32 %v124, %v409
    %v639 = vsub.f32 %v125, %v409
    %v640 = vsub.f32 %v126, %v409
    %v641 = vsub.f32 %v127, %v409
    %v642 = vsub.f32 %v128, %v409
    %v643 = vsub.f32 %v129, %v409
    %v644 = vsub.f32 %v130, %v409
    %v645 = vsub.f32 %v131, %v409
    %v646 = vsub.f32 %v132, %v409
    %v647 = vsub.f32 %v133, %v409
    %v648 = vsub.f32 %v134, %v409
    %v649 = vsub.f32 %v135, %v409
    %v650 = vsub.f32 %v136, %v409
    %v651 = vsub.f32 %v137, %v409
    %v652 = vsub.f32 %v138, %v409
    %v653 = vsub.f32 %v139, %v409
    %v654 = vsub.f32 %v140, %v409
    %v655 = vsub.f32 %v141, %v409
    %v656 = vsub.f32 %v142, %v409
    %v657 = vsub.f32 %v143, %v409
    %v658 = vsub.f32 %v144, %v409
    %v659 = vsub.f32 %v145, %v409
    %v660 = vsub.f32 %v146, %v409
    %v661 = vsub.f32 %v147, %v409
    %v662 = vsub.f32 %v148, %v409
    %v663 = vsub.f32 %v149, %v409
    %v664 = vsub.f32 %v150, %v409
    %v665 = vsub.f32 %v151, %v409
    %v666 = vsub.f32 %v152, %v409
    %v667 = vsub.f32 %v153, %v538
    %v668 = vsub.f32 %v154, %v538
    %v669 = vsub.f32 %v155, %v538
    %v670 = vsub.f32 %v156, %v538
    %v671 = vsub.f32 %v157, %v538
    %v672 = vsub.f32 %v158, %v538
    %v673 = vsub.f32 %v159, %v538
    %v674 = vsub.f32 %v160, %v538
    %v675 = vsub.f32 %v161, %v538
    %v676 = vsub.f32 %v162, %v538
    %v677 = vsub.f32 %v163, %v538
    %v678 = vsub.f32 %v164, %v538
    %v679 = vsub.f32 %v165, %v538
    %v680 = vsub.f32 %v166, %v538
    %v681 = vsub.f32 %v167, %v538
    %v682 = vsub.f32 %v168, %v538
    %v683 = vsub.f32 %v169, %v538
    %v684 = vsub.f32 %v170, %v538
    %v685 = vsub.f32 %v171, %v538
    %v686 = vsub.f32 %v172, %v538
    %v687 = vsub.f32 %v173, %v538
    %v688 = vsub.f32 %v174, %v538
    %v689 = vsub.f32 %v175, %v538
    %v690 = vsub.f32 %v176, %v538
    %v691 = vsub.f32 %v177, %v538
    %v692 = vsub.f32 %v178, %v538
    %v693 = vsub.f32 %v179, %v538
    %v694 = vsub.f32 %v180, %v538
    %v695 = vsub.f32 %v181, %v538
    %v696 = vsub.f32 %v182, %v538
    %v697 = vsub.f32 %v183, %v538
    %v698 = vsub.f32 %v184, %v538
    %v699 = vsub.f32 %v185, %v538
    %v700 = vsub.f32 %v186, %v538
    %v701 = vsub.f32 %v187, %v538
    %v702 = vsub.f32 %v188, %v538
    %v703 = vsub.f32 %v189, %v538
    %v704 = vsub.f32 %v190, %v538
    %v705 = vsub.f32 %v191, %v538
    %v706 = vsub.f32 %v192, %v538
    %v707 = vsub.f32 %v193, %v538
    %v708 = vsub.f32 %v194, %v538
    %v709 = vsub.f32 %v195, %v538
    %v710 = vsub.f32 %v196, %v538
    %v711 = vsub.f32 %v197, %v538
    %v712 = vsub.f32 %v198, %v538
    %v713 = vsub.f32 %v199, %v538
    %v714 = vsub.f32 %v200, %v538
    %v715 = vsub.f32 %v201, %v538
    %v716 = vsub.f32 %v202, %v538
    %v717 = vsub.f32 %v203, %v538
    %v718 = vsub.f32 %v204, %v538
    %v719 = vsub.f32 %v205, %v538
    %v720 = vsub.f32 %v206, %v538
    %v721 = vsub.f32 %v207, %v538
    %v722 = vsub.f32 %v208, %v538
    %v723 = vsub.f32 %v209, %v538
    %v724 = vsub.f32 %v210, %v538
    %v725 = vsub.f32 %v211, %v538
    %v726 = vsub.f32 %v212, %v538
    %v727 = vsub.f32 %v213, %v538
    %v728 = vsub.f32 %v214, %v538
    %v729 = vsub.f32 %v215, %v538
    %v730 = vsub.f32 %v216, %v538
    %v731 = vsub.f32 %v217, %v538
    %v732 = vsub.f32 %v218, %v538
    %v733 = vsub.f32 %v219, %v538
    %v734 = vsub.f32 %v220, %v538
    %v735 = vsub.f32 %v221, %v538
    %v736 = vsub.f32 %v222, %v538
    %v737 = vsub.f32 %v223, %v538
    %v738 = vsub.f32 %v224, %v538
    %v739 = vsub.f32 %v225, %v538
    %v740 = vsub.f32 %v226, %v538
    %v741 = vsub.f32 %v227, %v538
    %v742 = vsub.f32 %v228, %v538
    %v743 = vsub.f32 %v229, %v538
    %v744 = vsub.f32 %v230, %v538
    %v745 = vsub.f32 %v231, %v538
    %v746 = vsub.f32 %v232, %v538
    %v747 = vsub.f32 %v233, %v538
    %v748 = vsub.f32 %v234, %v538
    %v749 = vsub.f32 %v235, %v538
    %v750 = vsub.f32 %v236, %v538
    %v751 = vsub.f32 %v237, %v538
    %v752 = vsub.f32 %v238, %v538
    %v753 = vsub.f32 %v239, %v538
    %v754 = vsub.f32 %v240, %v538
    %v755 = vsub.f32 %v241, %v538
    %v756 = vsub.f32 %v242, %v538
    %v757 = vsub.f32 %v243, %v538
    %v758 = vsub.f32 %v244, %v538
    %v759 = vsub.f32 %v245, %v538
    %v760 = vsub.f32 %v246, %v538
    %v761 = vsub.f32 %v247, %v538
    %v762 = vsub.f32 %v248, %v538
    %v763 = vsub.f32 %v249, %v538
    %v764 = vsub.f32 %v250, %v538
    %v765 = vsub.f32 %v251, %v538
    %v766 = vsub.f32 %v252, %v538
    %v767 = vsub.f32 %v253, %v538
    %v768 = vsub.f32 %v254, %v538
    %v769 = vsub.f32 %v255, %v538
    %v770 = vsub.f32 %v256, %v538
    %v771 = vsub.f32 %v257, %v538
    %v772 = vsub.f32 %v258, %v538
    %v773 = vsub.f32 %v259, %v538
    %v774 = vsub.f32 %v260, %v538
    %v775 = vsub.f32 %v261, %v538
    %v776 = vsub.f32 %v262, %v538
    %v777 = vsub.f32 %v263, %v538
    %v778 = vsub.f32 %v264, %v538
    %v779 = vsub.f32 %v265, %v538
    %v780 = vsub.f32 %v266, %v538
    %v781 = vsub.f32 %v267, %v538
    %v782 = vsub.f32 %v268, %v538
    %v783 = vsub.f32 %v269, %v538
    %v784 = vsub.f32 %v270, %v538
    %v785 = vsub.f32 %v271, %v538
    %v786 = vsub.f32 %v272, %v538
    %v787 = vsub.f32 %v273, %v538
    %v788 = vsub.f32 %v274, %v538
    %v789 = vsub.f32 %v275, %v538
    %v790 = vsub.f32 %v276, %v538
    %v791 = vsub.f32 %v277, %v538
    %v792 = vsub.f32 %v278, %v538
    %v793 = vsub.f32 %v279, %v538
    %v794 = vsub.f32 %v280, %v538
    %v795 = vmul.f32 %v539, 1.442695
    %v796 = vpow.pop %v795
    %v797 = vmul.f32 %v540, 1.442695
    %v798 = vpow.pop %v797
    %v799 = vmul.f32 %v541, 1.442695
    %v800 = vpow.pop %v799
    %v801 = vmul.f32 %v542, 1.442695
    %v802 = vpow.pop %v801
    %v803 = vmul.f32 %v543, 1.442695
    %v804 = vpow.pop %v803
    %v805 = vmul.f32 %v544, 1.442695
    %v806 = vpow.pop %v805
    %v807 = vmul.f32 %v545, 1.442695
    %v808 = vpow.pop %v807
    %v809 = vmul.f32 %v546, 1.442695
    %v810 = vpow.pop %v809
    %v811 = vmul.f32 %v547, 1.442695
    %v812 = vpow.pop %v811
    %v813 = vmul.f32 %v548, 1.442695
    %v814 = vpow.pop %v813
    %v815 = vmul.f32 %v549, 1.442695
    %v816 = vpow.pop %v815
    %v817 = vmul.f32 %v550, 1.442695
    %v818 = vpow.pop %v817
    %v819 = vmul.f32 %v551, 1.442695
    %v820 = vpow.pop %v819
    %v821 = vmul.f32 %v552, 1.442695
    %v822 = vpow.pop %v821
    %v823 = vmul.f32 %v553, 1.442695
    %v824 = vpow.pop %v823
    %v825 = vmul.f32 %v554, 1.442695
    %v826 = vpow.pop %v825
    %v827 = vmul.f32 %v555, 1.442695
    %v828 = vpow.pop %v827
    %v829 = vmul.f32 %v556, 1.442695
    %v830 = vpow.pop %v829
    %v831 = vmul.f32 %v557, 1.442695
    %v832 = vpow.pop %v831
    %v833 = vmul.f32 %v558, 1.442695
    %v834 = vpow.pop %v833
    %v835 = vmul.f32 %v559, 1.442695
    %v836 = vpow.pop %v835
    %v837 = vmul.f32 %v560, 1.442695
    %v838 = vpow.pop %v837
    %v839 = vmul.f32 %v561, 1.442695
    %v840 = vpow.pop %v839
    %v841 = vmul.f32 %v562, 1.442695
    %v842 = vpow.pop %v841
    %v843 = vmul.f32 %v563, 1.442695
    %v844 = vpow.pop %v843
    %v845 = vmul.f32 %v564, 1.442695
    %v846 = vpow.pop %v845
    %v847 = vmul.f32 %v565, 1.442695
    %v848 = vpow.pop %v847
    %v849 = vmul.f32 %v566, 1.442695
    %v850 = vpow.pop %v849
    %v851 = vmul.f32 %v567, 1.442695
    %v852 = vpow.pop %v851
    %v853 = vmul.f32 %v568, 1.442695
    %v854 = vpow.pop %v853
    %v855 = vmul.f32 %v569, 1.442695
    %v856 = vpow.pop %v855
    %v857 = vmul.f32 %v570, 1.442695
    %v858 = vpow.pop %v857
    %v859 = vmul.f32 %v571, 1.442695
    %v860 = vpow.pop %v859
    %v861 = vmul.f32 %v572, 1.442695
    %v862 = vpow.pop %v861
    %v863 = vmul.f32 %v573, 1.442695
    %v864 = vpow.pop %v863
    %v865 = vmul.f32 %v574, 1.442695
    %v866 = vpow.pop %v865
    %v867 = vmul.f32 %v575, 1.442695
    %v868 = vpow.pop %v867
    %v869 = vmul.f32 %v576, 1.442695
    %v870 = vpow.pop %v869
    %v871 = vmul.f32 %v577, 1.442695
    %v872 = vpow.pop %v871
    %v873 = vmul.f32 %v578, 1.442695
    %v874 = vpow.pop %v873
    %v875 = vmul.f32 %v579, 1.442695
    %v876 = vpow.pop %v875
    %v877 = vmul.f32 %v580, 1.442695
    %v878 = vpow.pop %v877
    %v879 = vmul.f32 %v581, 1.442695
    %v880 = vpow.pop %v879
    %v881 = vmul.f32 %v582, 1.442695
    %v882 = vpow.pop %v881
    %v883 = vmul.f32 %v583, 1.442695
    %v884 = vpow.pop %v883
    %v885 = vmul.f32 %v584, 1.442695
    %v886 = vpow.pop %v885
    %v887 = vmul.f32 %v585, 1.442695
    %v888 = vpow.pop %v887
    %v889 = vmul.f32 %v586, 1.442695
    %v890 = vpow.pop %v889
    %v891 = vmul.f32 %v587, 1.442695
    %v892 = vpow.pop %v891
    %v893 = vmul.f32 %v588, 1.442695
    %v894 = vpow.pop %v893
    %v895 = vmul.f32 %v589, 1.442695
    %v896 = vpow.pop %v895
    %v897 = vmul.f32 %v590, 1.442695
    %v898 = vpow.pop %v897
    %v899 = vmul.f32 %v591, 1.442695
    %v900 = vpow.pop %v899
    %v901 = vmul.f32 %v592, 1.442695
    %v902 = vpow.pop %v901
    %v903 = vmul.f32 %v593, 1.442695
    %v904 = vpow.pop %v903
    %v905 = vmul.f32 %v594, 1.442695
    %v906 = vpow.pop %v905
    %v907 = vmul.f32 %v595, 1.442695
    %v908 = vpow.pop %v907
    %v909 = vmul.f32 %v596, 1.442695
    %v910 = vpow.pop %v909
    %v911 = vmul.f32 %v597, 1.442695
    %v912 = vpow.pop %v911
    %v913 = vmul.f32 %v598, 1.442695
    %v914 = vpow.pop %v913
    %v915 = vmul.f32 %v599, 1.442695
    %v916 = vpow.pop %v915
    %v917 = vmul.f32 %v600, 1.442695
    %v918 = vpow.pop %v917
    %v919 = vmul.f32 %v601, 1.442695
    %v920 = vpow.pop %v919
    %v921 = vmul.f32 %v602, 1.442695
    %v922 = vpow.pop %v921
    %v923 = vmul.f32 %v603, 1.442695
    %v924 = vpow.pop %v923
    %v925 = vmul.f32 %v604, 1.442695
    %v926 = vpow.pop %v925
    %v927 = vmul.f32 %v605, 1.442695
    %v928 = vpow.pop %v927
    %v929 = vmul.f32 %v606, 1.442695
    %v930 = vpow.pop %v929
    %v931 = vmul.f32 %v607, 1.442695
    %v932 = vpow.pop %v931
    %v933 = vmul.f32 %v608, 1.442695
    %v934 = vpow.pop %v933
    %v935 = vmul.f32 %v609, 1.442695
    %v936 = vpow.pop %v935
    %v937 = vmul.f32 %v610, 1.442695
    %v938 = vpow.pop %v937
    %v939 = vmul.f32 %v611, 1.442695
    %v940 = vpow.pop %v939
    %v941 = vmul.f32 %v612, 1.442695
    %v942 = vpow.pop %v941
    %v943 = vmul.f32 %v613, 1.442695
    %v944 = vpow.pop %v943
    %v945 = vmul.f32 %v614, 1.442695
    %v946 = vpow.pop %v945
    %v947 = vmul.f32 %v615, 1.442695
    %v948 = vpow.pop %v947
    %v949 = vmul.f32 %v616, 1.442695
    %v950 = vpow.pop %v949
    %v951 = vmul.f32 %v617, 1.442695
    %v952 = vpow.pop %v951
    %v953 = vmul.f32 %v618, 1.442695
    %v954 = vpow.pop %v953
    %v955 = vmul.f32 %v619, 1.442695
    %v956 = vpow.pop %v955
    %v957 = vmul.f32 %v620, 1.442695
    %v958 = vpow.pop %v957
    %v959 = vmul.f32 %v621, 1.442695
    %v960 = vpow.pop %v959
    %v961 = vmul.f32 %v622, 1.442695
    %v962 = vpow.pop %v961
    %v963 = vmul.f32 %v623, 1.442695
    %v964 = vpow.pop %v963
    %v965 = vmul.f32 %v624, 1.442695
    %v966 = vpow.pop %v965
    %v967 = vmul.f32 %v625, 1.442695
    %v968 = vpow.pop %v967
    %v969 = vmul.f32 %v626, 1.442695
    %v970 = vpow.pop %v969
    %v971 = vmul.f32 %v627, 1.442695
    %v972 = vpow.pop %v971
    %v973 = vmul.f32 %v628, 1.442695
    %v974 = vpow.pop %v973
    %v975 = vmul.f32 %v629, 1.442695
    %v976 = vpow.pop %v975
    %v977 = vmul.f32 %v630, 1.442695
    %v978 = vpow.pop %v977
    %v979 = vmul.f32 %v631, 1.442695
    %v980 = vpow.pop %v979
    %v981 = vmul.f32 %v632, 1.442695
    %v982 = vpow.pop %v981
    %v983 = vmul.f32 %v633, 1.442695
    %v984 = vpow.pop %v983
    %v985 = vmul.f32 %v634, 1.442695
    %v986 = vpow.pop %v985
    %v987 = vmul.f32 %v635, 1.442695
    %v988 = vpow.pop %v987
    %v989 = vmul.f32 %v636, 1.442695
    %v990 = vpow.pop %v989
    %v991 = vmul.f32 %v637, 1.442695
    %v992 = vpow.pop %v991
    %v993 = vmul.f32 %v638, 1.442695
    %v994 = vpow.pop %v993
    %v995 = vmul.f32 %v639, 1.442695
    %v996 = vpow.pop %v995
    %v997 = vmul.f32 %v640, 1.442695
    %v998 = vpow.pop %v997
    %v999 = vmul.f32 %v641, 1.442695
    %v1000 = vpow.pop %v999
    %v1001 = vmul.f32 %v642, 1.442695
    %v1002 = vpow.pop %v1001
    %v1003 = vmul.f32 %v643, 1.442695
    %v1004 = vpow.pop %v1003
    %v1005 = vmul.f32 %v644, 1.442695
    %v1006 = vpow.pop %v1005
    %v1007 = vmul.f32 %v645, 1.442695
    %v1008 = vpow.pop %v1007
    %v1009 = vmul.f32 %v646, 1.442695
    %v1010 = vpow.pop %v1009
    %v1011 = vmul.f32 %v647, 1.442695
    %v1012 = vpow.pop %v1011
    %v1013 = vmul.f32 %v648, 1.442695
    %v1014 = vpow.pop %v1013
    %v1015 = vmul.f32 %v649, 1.442695
    %v1016 = vpow.pop %v1015
    %v1017 = vmul.f32 %v650, 1.442695
    %v1018 = vpow.pop %v1017
    %v1019 = vmul.f32 %v651, 1.442695
    %v1020 = vpow.pop %v1019
    %v1021 = vmul.f32 %v652, 1.442695
    %v1022 = vpow.pop %v1021
    %v1023 = vmul.f32 %v653, 1.442695
    %v1024 = vpow.pop %v1023
    %v1025 = vmul.f32 %v654, 1.442695
    %v1026 = vpow.pop %v1025
    %v1027 = vmul.f32 %v655, 1.442695
    %v1028 = vpow.pop %v1027
    %v1029 = vmul.f32 %v656, 1.442695
    %v1030 = vpow.pop %v1029
    %v1031 = vmul.f32 %v657, 1.442695
    %v1032 = vpow.pop %v1031
    %v1033 = vmul.f32 %v658, 1.442695
    %v1034 = vpow.pop %v1033
    %v1035 = vmul.f32 %v659, 1.442695
    %v1036 = vpow.pop %v1035
    %v1037 = vmul.f32 %v660, 1.442695
    %v1038 = vpow.pop %v1037
    %v1039 = vmul.f32 %v661, 1.442695
    %v1040 = vpow.pop %v1039
    %v1041 = vmul.f32 %v662, 1.442695
    %v1042 = vpow.pop %v1041
    %v1043 = vmul.f32 %v663, 1.442695
    %v1044 = vpow.pop %v1043
    %v1045 = vmul.f32 %v664, 1.442695
    %v1046 = vpow.pop %v1045
    %v1047 = vmul.f32 %v665, 1.442695
    %v1048 = vpow.pop %v1047
    %v1049 = vmul.f32 %v666, 1.442695
    %v1050 = vpow.pop %v1049
    %v1051 = vmul.f32 %v667, 1.442695
    %v1052 = vpow.pop %v1051
    %v1053 = vmul.f32 %v668, 1.442695
    %v1054 = vpow.pop %v1053
    %v1055 = vmul.f32 %v669, 1.442695
    %v1056 = vpow.pop %v1055
    %v1057 = vmul.f32 %v670, 1.442695
    %v1058 = vpow.pop %v1057
    %v1059 = vmul.f32 %v671, 1.442695
    %v1060 = vpow.pop %v1059
    %v1061 = vmul.f32 %v672, 1.442695
    %v1062 = vpow.pop %v1061
    %v1063 = vmul.f32 %v673, 1.442695
    %v1064 = vpow.pop %v1063
    %v1065 = vmul.f32 %v674, 1.442695
    %v1066 = vpow.pop %v1065
    %v1067 = vmul.f32 %v675, 1.442695
    %v1068 = vpow.pop %v1067
    %v1069 = vmul.f32 %v676, 1.442695
    %v1070 = vpow.pop %v1069
    %v1071 = vmul.f32 %v677, 1.442695
    %v1072 = vpow.pop %v1071
    %v1073 = vmul.f32 %v678, 1.442695
    %v1074 = vpow.pop %v1073
    %v1075 = vmul.f32 %v679, 1.442695
    %v1076 = vpow.pop %v1075
    %v1077 = vmul.f32 %v680, 1.442695
    %v1078 = vpow.pop %v1077
    %v1079 = vmul.f32 %v681, 1.442695
    %v1080 = vpow.pop %v1079
    %v1081 = vmul.f32 %v682, 1.442695
    %v1082 = vpow.pop %v1081
    %v1083 = vmul.f32 %v683, 1.442695
    %v1084 = vpow.pop %v1083
    %v1085 = vmul.f32 %v684, 1.442695
    %v1086 = vpow.pop %v1085
    %v1087 = vmul.f32 %v685, 1.442695
    %v1088 = vpow.pop %v1087
    %v1089 = vmul.f32 %v686, 1.442695
    %v1090 = vpow.pop %v1089
    %v1091 = vmul.f32 %v687, 1.442695
    %v1092 = vpow.pop %v1091
    %v1093 = vmul.f32 %v688, 1.442695
    %v1094 = vpow.pop %v1093
    %v1095 = vmul.f32 %v689, 1.442695
    %v1096 = vpow.pop %v1095
    %v1097 = vmul.f32 %v690, 1.442695
    %v1098 = vpow.pop %v1097
    %v1099 = vmul.f32 %v691, 1.442695
    %v1100 = vpow.pop %v1099
    %v1101 = vmul.f32 %v692, 1.442695
    %v1102 = vpow.pop %v1101
    %v1103 = vmul.f32 %v693, 1.442695
    %v1104 = vpow.pop %v1103
    %v1105 = vmul.f32 %v694, 1.442695
    %v1106 = vpow.pop %v1105
    %v1107 = vmul.f32 %v695, 1.442695
    %v1108 = vpow.pop %v1107
    %v1109 = vmul.f32 %v696, 1.442695
    %v1110 = vpow.pop %v1109
    %v1111 = vmul.f32 %v697, 1.442695
    %v1112 = vpow.pop %v1111
    %v1113 = vmul.f32 %v698, 1.442695
    %v1114 = vpow.pop %v1113
    %v1115 = vmul.f32 %v699, 1.442695
    %v1116 = vpow.pop %v1115
    %v1117 = vmul.f32 %v700, 1.442695
    %v1118 = vpow.pop %v1117
    %v1119 = vmul.f32 %v701, 1.442695
    %v1120 = vpow.pop %v1119
    %v1121 = vmul.f32 %v702, 1.442695
    %v1122 = vpow.pop %v1121
    %v1123 = vmul.f32 %v703, 1.442695
    %v1124 = vpow.pop %v1123
    %v1125 = vmul.f32 %v704, 1.442695
    %v1126 = vpow.pop %v1125
    %v1127 = vmul.f32 %v705, 1.442695
    %v1128 = vpow.pop %v1127
    %v1129 = vmul.f32 %v706, 1.442695
    %v1130 = vpow.pop %v1129
    %v1131 = vmul.f32 %v707, 1.442695
    %v1132 = vpow.pop %v1131
    %v1133 = vmul.f32 %v708, 1.442695
    %v1134 = vpow.pop %v1133
    %v1135 = vmul.f32 %v709, 1.442695
    %v1136 = vpow.pop %v1135
    %v1137 = vmul.f32 %v710, 1.442695
    %v1138 = vpow.pop %v1137
    %v1139 = vmul.f32 %v711, 1.442695
    %v1140 = vpow.pop %v1139
    %v1141 = vmul.f32 %v712, 1.442695
    %v1142 = vpow.pop %v1141
    %v1143 = vmul.f32 %v713, 1.442695
    %v1144 = vpow.pop %v1143
    %v1145 = vmul.f32 %v714, 1.442695
    %v1146 = vpow.pop %v1145
    %v1147 = vmul.f32 %v715, 1.442695
    %v1148 = vpow.pop %v1147
    %v1149 = vmul.f32 %v716, 1.442695
    %v1150 = vpow.pop %v1149
    %v1151 = vmul.f32 %v717, 1.442695
    %v1152 = vpow.pop %v1151
    %v1153 = vmul.f32 %v718, 1.442695
    %v1154 = vpow.pop %v1153
    %v1155 = vmul.f32 %v719, 1.442695
    %v1156 = vpow.pop %v1155
    %v1157 = vmul.f32 %v720, 1.442695
    %v1158 = vpow.pop %v1157
    %v1159 = vmul.f32 %v721, 1.442695
    %v1160 = vpow.pop %v1159
    %v1161 = vmul.f32 %v722, 1.442695
    %v1162 = vpow.pop %v1161
    %v1163 = vmul.f32 %v723, 1.442695
    %v1164 = vpow.pop %v1163
    %v1165 = vmul.f32 %v724, 1.442695
    %v1166 = vpow.pop %v1165
    %v1167 = vmul.f32 %v725, 1.442695
    %v1168 = vpow.pop %v1167
    %v1169 = vmul.f32 %v726, 1.442695
    %v1170 = vpow.pop %v1169
    %v1171 = vmul.f32 %v727, 1.442695
    %v1172 = vpow.pop %v1171
    %v1173 = vmul.f32 %v728, 1.442695
    %v1174 = vpow.pop %v1173
    %v1175 = vmul.f32 %v729, 1.442695
    %v1176 = vpow.pop %v1175
    %v1177 = vmul.f32 %v730, 1.442695
    %v1178 = vpow.pop %v1177
    %v1179 = vmul.f32 %v731, 1.442695
    %v1180 = vpow.pop %v1179
    %v1181 = vmul.f32 %v732, 1.442695
    %v1182 = vpow.pop %v1181
    %v1183 = vmul.f32 %v733, 1.442695
    %v1184 = vpow.pop %v1183
    %v1185 = vmul.f32 %v734, 1.442695
    %v1186 = vpow.pop %v1185
    %v1187 = vmul.f32 %v735, 1.442695
    %v1188 = vpow.pop %v1187
    %v1189 = vmul.f32 %v736, 1.442695
    %v1190 = vpow.pop %v1189
    %v1191 = vmul.f32 %v737, 1.442695
    %v1192 = vpow.pop %v1191
    %v1193 = vmul.f32 %v738, 1.442695
    %v1194 = vpow.pop %v1193
    %v1195 = vmul.f32 %v739, 1.442695
    %v1196 = vpow.pop %v1195
    %v1197 = vmul.f32 %v740, 1.442695
    %v1198 = vpow.pop %v1197
    %v1199 = vmul.f32 %v741, 1.442695
    %v1200 = vpow.pop %v1199
    %v1201 = vmul.f32 %v742, 1.442695
    %v1202 = vpow.pop %v1201
    %v1203 = vmul.f32 %v743, 1.442695
    %v1204 = vpow.pop %v1203
    %v1205 = vmul.f32 %v744, 1.442695
    %v1206 = vpow.pop %v1205
    %v1207 = vmul.f32 %v745, 1.442695
    %v1208 = vpow.pop %v1207
    %v1209 = vmul.f32 %v746, 1.442695
    %v1210 = vpow.pop %v1209
    %v1211 = vmul.f32 %v747, 1.442695
    %v1212 = vpow.pop %v1211
    %v1213 = vmul.f32 %v748, 1.442695
    %v1214 = vpow.pop %v1213
    %v1215 = vmul.f32 %v749, 1.442695
    %v1216 = vpow.pop %v1215
    %v1217 = vmul.f32 %v750, 1.442695
    %v1218 = vpow.pop %v1217
    %v1219 = vmul.f32 %v751, 1.442695
    %v1220 = vpow.pop %v1219
    %v1221 = vmul.f32 %v752, 1.442695
    %v1222 = vpow.pop %v1221
    %v1223 = vmul.f32 %v753, 1.442695
    %v1224 = vpow.pop %v1223
    %v1225 = vmul.f32 %v754, 1.442695
    %v1226 = vpow.pop %v1225
    %v1227 = vmul.f32 %v755, 1.442695
    %v1228 = vpow.pop %v1227
    %v1229 = vmul.f32 %v756, 1.442695
    %v1230 = vpow.pop %v1229
    %v1231 = vmul.f32 %v757, 1.442695
    %v1232 = vpow.pop %v1231
    %v1233 = vmul.f32 %v758, 1.442695
    %v1234 = vpow.pop %v1233
    %v1235 = vmul.f32 %v759, 1.442695
    %v1236 = vpow.pop %v1235
    %v1237 = vmul.f32 %v760, 1.442695
    %v1238 = vpow.pop %v1237
    %v1239 = vmul.f32 %v761, 1.442695
    %v1240 = vpow.pop %v1239
    %v1241 = vmul.f32 %v762, 1.442695
    %v1242 = vpow.pop %v1241
    %v1243 = vmul.f32 %v763, 1.442695
    %v1244 = vpow.pop %v1243
    %v1245 = vmul.f32 %v764, 1.442695
    %v1246 = vpow.pop %v1245
    %v1247 = vmul.f32 %v765, 1.442695
    %v1248 = vpow.pop %v1247
    %v1249 = vmul.f32 %v766, 1.442695
    %v1250 = vpow.pop %v1249
    %v1251 = vmul.f32 %v767, 1.442695
    %v1252 = vpow.pop %v1251
    %v1253 = vmul.f32 %v768, 1.442695
    %v1254 = vpow.pop %v1253
    %v1255 = vmul.f32 %v769, 1.442695
    %v1256 = vpow.pop %v1255
    %v1257 = vmul.f32 %v770, 1.442695
    %v1258 = vpow.pop %v1257
    %v1259 = vmul.f32 %v771, 1.442695
    %v1260 = vpow.pop %v1259
    %v1261 = vmul.f32 %v772, 1.442695
    %v1262 = vpow.pop %v1261
    %v1263 = vmul.f32 %v773, 1.442695
    %v1264 = vpow.pop %v1263
    %v1265 = vmul.f32 %v774, 1.442695
    %v1266 = vpow.pop %v1265
    %v1267 = vmul.f32 %v775, 1.442695
    %v1268 = vpow.pop %v1267
    %v1269 = vmul.f32 %v776, 1.442695
    %v1270 = vpow.pop %v1269
    %v1271 = vmul.f32 %v777, 1.442695
    %v1272 = vpow.pop %v1271
    %v1273 = vmul.f32 %v778, 1.442695
    %v1274 = vpow.pop %v1273
    %v1275 = vmul.f32 %v779, 1.442695
    %v1276 = vpow.pop %v1275
    %v1277 = vmul.f32 %v780, 1.442695
    %v1278 = vpow.pop %v1277
    %v1279 = vmul.f32 %v781, 1.442695
    %v1280 = vpow.pop %v1279
    %v1281 = vmul.f32 %v782, 1.442695
    %v1282 = vpow.pop %v1281
    %v1283 = vmul.f32 %v783, 1.442695
    %v1284 = vpow.pop %v1283
    %v1285 = vmul.f32 %v784, 1.442695
    %v1286 = vpow.pop %v1285
    %v1287 = vmul.f32 %v785, 1.442695
    %v1288 = vpow.pop %v1287
    %v1289 = vmul.f32 %v786, 1.442695
    %v1290 = vpow.pop %v1289
    %v1291 = vmul.f32 %v787, 1.442695
    %v1292 = vpow.pop %v1291
    %v1293 = vmul.f32 %v788, 1.442695
    %v1294 = vpow.pop %v1293
    %v1295 = vmul.f32 %v789, 1.442695
    %v1296 = vpow.pop %v1295
    %v1297 = vmul.f32 %v790, 1.442695
    %v1298 = vpow.pop %v1297
    %v1299 = vmul.f32 %v791, 1.442695
    %v1300 = vpow.pop %v1299
    %v1301 = vmul.f32 %v792, 1.442695
    %v1302 = vpow.pop %v1301
    %v1303 = vmul.f32 %v793, 1.442695
    %v1304 = vpow.pop %v1303
    %v1305 = vmul.f32 %v794, 1.442695
    %v1306 = vpow.pop %v1305
    %v1307 = vadd.f32 %v796, %v798
    %v1308 = vadd.f32 %v1307, %v800
    %v1309 = vadd.f32 %v1308, %v802
    %v1310 = vadd.f32 %v1309, %v804
    %v1311 = vadd.f32 %v1310, %v806
    %v1312 = vadd.f32 %v1311, %v808
    %v1313 = vadd.f32 %v1312, %v810
    %v1314 = vadd.f32 %v1313, %v812
    %v1315 = vadd.f32 %v1314, %v814
    %v1316 = vadd.f32 %v1315, %v816
    %v1317 = vadd.f32 %v1316, %v818
    %v1318 = vadd.f32 %v1317, %v820
    %v1319 = vadd.f32 %v1318, %v822
    %v1320 = vadd.f32 %v1319, %v824
    %v1321 = vadd.f32 %v1320, %v826
    %v1322 = vadd.f32 %v1321, %v828
    %v1323 = vadd.f32 %v1322, %v830
    %v1324 = vadd.f32 %v1323, %v832
    %v1325 = vadd.f32 %v1324, %v834
    %v1326 = vadd.f32 %v1325, %v836
    %v1327 = vadd.f32 %v1326, %v838
    %v1328 = vadd.f32 %v1327, %v840
    %v1329 = vadd.f32 %v1328, %v842
    %v1330 = vadd.f32 %v1329, %v844
    %v1331 = vadd.f32 %v1330, %v846
    %v1332 = vadd.f32 %v1331, %v848
    %v1333 = vadd.f32 %v1332, %v850
    %v1334 = vadd.f32 %v1333, %v852
    %v1335 = vadd.f32 %v1334, %v854
    %v1336 = vadd.f32 %v1335, %v856
    %v1337 = vadd.f32 %v1336, %v858
    %v1338 = vadd.f32 %v1337, %v860
    %v1339 = vadd.f32 %v1338, %v862
    %v1340 = vadd.f32 %v1339, %v864
    %v1341 = vadd.f32 %v1340, %v866
    %v1342 = vadd.f32 %v1341, %v868
    %v1343 = vadd.f32 %v1342, %v870
    %v1344 = vadd.f32 %v1343, %v872
    %v1345 = vadd.f32 %v1344, %v874
    %v1346 = vadd.f32 %v1345, %v876
    %v1347 = vadd.f32 %v1346, %v878
    %v1348 = vadd.f32 %v1347, %v880
    %v1349 = vadd.f32 %v1348, %v882
    %v1350 = vadd.f32 %v1349, %v884
    %v1351 = vadd.f32 %v1350, %v886
    %v1352 = vadd.f32 %v1351, %v888
    %v1353 = vadd.f32 %v1352, %v890
    %v1354 = vadd.f32 %v1353, %v892
    %v1355 = vadd.f32 %v1354, %v894
    %v1356 = vadd.f32 %v1355, %v896
    %v1357 = vadd.f32 %v1356, %v898
    %v1358 = vadd.f32 %v1357, %v900
    %v1359 = vadd.f32 %v1358, %v902
    %v1360 = vadd.f32 %v1359, %v904
    %v1361 = vadd.f32 %v1360, %v906
    %v1362 = vadd.f32 %v1361, %v908
    %v1363 = vadd.f32 %v1362, %v910
    %v1364 = vadd.f32 %v1363, %v912
    %v1365 = vadd.f32 %v1364, %v914
    %v1366 = vadd.f32 %v1365, %v916
    %v1367 = vadd.f32 %v1366, %v918
    %v1368 = vadd.f32 %v1367, %v920
    %v1369 = vadd.f32 %v1368, %v922
    %v1370 = vadd.f32 %v1369, %v924
    %v1371 = vadd.f32 %v1370, %v926
    %v1372 = vadd.f32 %v1371, %v928
    %v1373 = vadd.f32 %v1372, %v930
    %v1374 = vadd.f32 %v1373, %v932
    %v1375 = vadd.f32 %v1374, %v934
    %v1376 = vadd.f32 %v1375, %v936
    %v1377 = vadd.f32 %v1376, %v938
    %v1378 = vadd.f32 %v1377, %v940
    %v1379 = vadd.f32 %v1378, %v942
    %v1380 = vadd.f32 %v1379, %v944
    %v1381 = vadd.f32 %v1380, %v946
    %v1382 = vadd.f32 %v1381, %v948
    %v1383 = vadd.f32 %v1382, %v950
    %v1384 = vadd.f32 %v1383, %v952
    %v1385 = vadd.f32 %v1384, %v954
    %v1386 = vadd.f32 %v1385, %v956
    %v1387 = vadd.f32 %v1386, %v958
    %v1388 = vadd.f32 %v1387, %v960
    %v1389 = vadd.f32 %v1388, %v962
    %v1390 = vadd.f32 %v1389, %v964
    %v1391 = vadd.f32 %v1390, %v966
    %v1392 = vadd.f32 %v1391, %v968
    %v1393 = vadd.f32 %v1392, %v970
    %v1394 = vadd.f32 %v1393, %v972
    %v1395 = vadd.f32 %v1394, %v974
    %v1396 = vadd.f32 %v1395, %v976
    %v1397 = vadd.f32 %v1396, %v978
    %v1398 = vadd.f32 %v1397, %v980
    %v1399 = vadd.f32 %v1398, %v982
    %v1400 = vadd.f32 %v1399, %v984
    %v1401 = vadd.f32 %v1400, %v986
    %v1402 = vadd.f32 %v1401, %v988
    %v1403 = vadd.f32 %v1402, %v990
    %v1404 = vadd.f32 %v1403, %v992
    %v1405 = vadd.f32 %v1404, %v994
    %v1406 = vadd.f32 %v1405, %v996
    %v1407 = vadd.f32 %v1406, %v998
    %v1408 = vadd.f32 %v1407, %v1000
    %v1409 = vadd.f32 %v1408, %v1002
    %v1410 = vadd.f32 %v1409, %v1004
    %v1411 = vadd.f32 %v1410, %v1006
    %v1412 = vadd.f32 %v1411, %v1008
    %v1413 = vadd.f32 %v1412, %v1010
    %v1414 = vadd.f32 %v1413, %v1012
    %v1415 = vadd.f32 %v1414, %v1014
    %v1416 = vadd.f32 %v1415, %v1016
    %v1417 = vadd.f32 %v1416, %v1018
    %v1418 = vadd.f32 %v1417, %v1020
    %v1419 = vadd.f32 %v1418, %v1022
    %v1420 = vadd.f32 %v1419, %v1024
    %v1421 = vadd.f32 %v1420, %v1026
    %v1422 = vadd.f32 %v1421, %v1028
    %v1423 = vadd.f32 %v1422, %v1030
    %v1424 = vadd.f32 %v1423, %v1032
    %v1425 = vadd.f32 %v1424, %v1034
    %v1426 = vadd.f32 %v1425, %v1036
    %v1427 = vadd.f32 %v1426, %v1038
    %v1428 = vadd.f32 %v1427, %v1040
    %v1429 = vadd.f32 %v1428, %v1042
    %v1430 = vadd.f32 %v1429, %v1044
    %v1431 = vadd.f32 %v1430, %v1046
    %v1432 = vadd.f32 %v1431, %v1048
    %v1433 = vadd.f32 %v1432, %v1050
    %1434 = vadd.xlane.f32.xlu0 %v1433
    %v1435 = vpop.xlane.xlu0 %1434
    %v1436 = vadd.f32 %v1052, %v1054
    %v1437 = vadd.f32 %v1436, %v1056
    %v1438 = vadd.f32 %v1437, %v1058
    %v1439 = vadd.f32 %v1438, %v1060
    %v1440 = vadd.f32 %v1439, %v1062
    %v1441 = vadd.f32 %v1440, %v1064
    %v1442 = vadd.f32 %v1441, %v1066
    %v1443 = vadd.f32 %v1442, %v1068
    %v1444 = vadd.f32 %v1443, %v1070
    %v1445 = vadd.f32 %v1444, %v1072
    %v1446 = vadd.f32 %v1445, %v1074
    %v1447 = vadd.f32 %v1446, %v1076
    %v1448 = vadd.f32 %v1447, %v1078
    %v1449 = vadd.f32 %v1448, %v1080
    %v1450 = vadd.f32 %v1449, %v1082
    %v1451 = vadd.f32 %v1450, %v1084
    %v1452 = vadd.f32 %v1451, %v1086
    %v1453 = vadd.f32 %v1452, %v1088
    %v1454 = vadd.f32 %v1453, %v1090
    %v1455 = vadd.f32 %v1454, %v1092
    %v1456 = vadd.f32 %v1455, %v1094
    %v1457 = vadd.f32 %v1456, %v1096
    %v1458 = vadd.f32 %v1457, %v1098
    %v1459 = vadd.f32 %v1458, %v1100
    %v1460 = vadd.f32 %v1459, %v1102
    %v1461 = vadd.f32 %v1460, %v1104
    %v1462 = vadd.f32 %v1461, %v1106
    %v1463 = vadd.f32 %v1462, %v1108
    %v1464 = vadd.f32 %v1463, %v1110
    %v1465 = vadd.f32 %v1464, %v1112
    %v1466 = vadd.f32 %v1465, %v1114
    %v1467 = vadd.f32 %v1466, %v1116
    %v1468 = vadd.f32 %v1467, %v1118
    %v1469 = vadd.f32 %v1468, %v1120
    %v1470 = vadd.f32 %v1469, %v1122
    %v1471 = vadd.f32 %v1470, %v1124
    %v1472 = vadd.f32 %v1471, %v1126
    %v1473 = vadd.f32 %v1472, %v1128
    %v1474 = vadd.f32 %v1473, %v1130
    %v1475 = vadd.f32 %v1474, %v1132
    %v1476 = vadd.f32 %v1475, %v1134
    %v1477 = vadd.f32 %v1476, %v1136
    %v1478 = vadd.f32 %v1477, %v1138
    %v1479 = vadd.f32 %v1478, %v1140
    %v1480 = vadd.f32 %v1479, %v1142
    %v1481 = vadd.f32 %v1480, %v1144
    %v1482 = vadd.f32 %v1481, %v1146
    %v1483 = vadd.f32 %v1482, %v1148
    %v1484 = vadd.f32 %v1483, %v1150
    %v1485 = vadd.f32 %v1484, %v1152
    %v1486 = vadd.f32 %v1485, %v1154
    %v1487 = vadd.f32 %v1486, %v1156
    %v1488 = vadd.f32 %v1487, %v1158
    %v1489 = vadd.f32 %v1488, %v1160
    %v1490 = vadd.f32 %v1489, %v1162
    %v1491 = vadd.f32 %v1490, %v1164
    %v1492 = vadd.f32 %v1491, %v1166
    %v1493 = vadd.f32 %v1492, %v1168
    %v1494 = vadd.f32 %v1493, %v1170
    %v1495 = vadd.f32 %v1494, %v1172
    %v1496 = vadd.f32 %v1495, %v1174
    %v1497 = vadd.f32 %v1496, %v1176
    %v1498 = vadd.f32 %v1497, %v1178
    %v1499 = vadd.f32 %v1498, %v1180
    %v1500 = vadd.f32 %v1499, %v1182
    %v1501 = vadd.f32 %v1500, %v1184
    %v1502 = vadd.f32 %v1501, %v1186
    %v1503 = vadd.f32 %v1502, %v1188
    %v1504 = vadd.f32 %v1503, %v1190
    %v1505 = vadd.f32 %v1504, %v1192
    %v1506 = vadd.f32 %v1505, %v1194
    %v1507 = vadd.f32 %v1506, %v1196
    %v1508 = vadd.f32 %v1507, %v1198
    %v1509 = vadd.f32 %v1508, %v1200
    %v1510 = vadd.f32 %v1509, %v1202
    %v1511 = vadd.f32 %v1510, %v1204
    %v1512 = vadd.f32 %v1511, %v1206
    %v1513 = vadd.f32 %v1512, %v1208
    %v1514 = vadd.f32 %v1513, %v1210
    %v1515 = vadd.f32 %v1514, %v1212
    %v1516 = vadd.f32 %v1515, %v1214
    %v1517 = vadd.f32 %v1516, %v1216
    %v1518 = vadd.f32 %v1517, %v1218
    %v1519 = vadd.f32 %v1518, %v1220
    %v1520 = vadd.f32 %v1519, %v1222
    %v1521 = vadd.f32 %v1520, %v1224
    %v1522 = vadd.f32 %v1521, %v1226
    %v1523 = vadd.f32 %v1522, %v1228
    %v1524 = vadd.f32 %v1523, %v1230
    %v1525 = vadd.f32 %v1524, %v1232
    %v1526 = vadd.f32 %v1525, %v1234
    %v1527 = vadd.f32 %v1526, %v1236
    %v1528 = vadd.f32 %v1527, %v1238
    %v1529 = vadd.f32 %v1528, %v1240
    %v1530 = vadd.f32 %v1529, %v1242
    %v1531 = vadd.f32 %v1530, %v1244
    %v1532 = vadd.f32 %v1531, %v1246
    %v1533 = vadd.f32 %v1532, %v1248
    %v1534 = vadd.f32 %v1533, %v1250
    %v1535 = vadd.f32 %v1534, %v1252
    %v1536 = vadd.f32 %v1535, %v1254
    %v1537 = vadd.f32 %v1536, %v1256
    %v1538 = vadd.f32 %v1537, %v1258
    %v1539 = vadd.f32 %v1538, %v1260
    %v1540 = vadd.f32 %v1539, %v1262
    %v1541 = vadd.f32 %v1540, %v1264
    %v1542 = vadd.f32 %v1541, %v1266
    %v1543 = vadd.f32 %v1542, %v1268
    %v1544 = vadd.f32 %v1543, %v1270
    %v1545 = vadd.f32 %v1544, %v1272
    %v1546 = vadd.f32 %v1545, %v1274
    %v1547 = vadd.f32 %v1546, %v1276
    %v1548 = vadd.f32 %v1547, %v1278
    %v1549 = vadd.f32 %v1548, %v1280
    %v1550 = vadd.f32 %v1549, %v1282
    %v1551 = vadd.f32 %v1550, %v1284
    %v1552 = vadd.f32 %v1551, %v1286
    %v1553 = vadd.f32 %v1552, %v1288
    %v1554 = vadd.f32 %v1553, %v1290
    %v1555 = vadd.f32 %v1554, %v1292
    %v1556 = vadd.f32 %v1555, %v1294
    %v1557 = vadd.f32 %v1556, %v1296
    %v1558 = vadd.f32 %v1557, %v1298
    %v1559 = vadd.f32 %v1558, %v1300
    %v1560 = vadd.f32 %v1559, %v1302
    %v1561 = vadd.f32 %v1560, %v1304
    %v1562 = vadd.f32 %v1561, %v1306
    %1563 = vadd.xlane.f32.xlu0 %v1562
    %v1564 = vpop.xlane.xlu0 %1563
    %v1565 = vlog2.pop %v1435
    %v1566 = vmul.f32 %v1565, 0.6931472
    %v1567 = vlog2.pop %v1564
    %v1568 = vmul.f32 %v1567, 0.6931472
    %v1569 = vadd.f32 %v409, %v1566
    %v1570 = vadd.f32 %v538, %v1568
    %v1571 = vsub.f32 %v25, %v1569
    %v1572 = vsub.f32 %v26, %v1569
    %v1573 = vsub.f32 %v27, %v1569
    %v1574 = vsub.f32 %v28, %v1569
    %v1575 = vsub.f32 %v29, %v1569
    %v1576 = vsub.f32 %v30, %v1569
    %v1577 = vsub.f32 %v31, %v1569
    %v1578 = vsub.f32 %v32, %v1569
    %v1579 = vsub.f32 %v33, %v1569
    %v1580 = vsub.f32 %v34, %v1569
    %v1581 = vsub.f32 %v35, %v1569
    %v1582 = vsub.f32 %v36, %v1569
    %v1583 = vsub.f32 %v37, %v1569
    %v1584 = vsub.f32 %v38, %v1569
    %v1585 = vsub.f32 %v39, %v1569
    %v1586 = vsub.f32 %v40, %v1569
    %v1587 = vsub.f32 %v41, %v1569
    %v1588 = vsub.f32 %v42, %v1569
    %v1589 = vsub.f32 %v43, %v1569
    %v1590 = vsub.f32 %v44, %v1569
    %v1591 = vsub.f32 %v45, %v1569
    %v1592 = vsub.f32 %v46, %v1569
    %v1593 = vsub.f32 %v47, %v1569
    %v1594 = vsub.f32 %v48, %v1569
    %v1595 = vsub.f32 %v49, %v1569
    %v1596 = vsub.f32 %v50, %v1569
    %v1597 = vsub.f32 %v51, %v1569
    %v1598 = vsub.f32 %v52, %v1569
    %v1599 = vsub.f32 %v53, %v1569
    %v1600 = vsub.f32 %v54, %v1569
    %v1601 = vsub.f32 %v55, %v1569
    %v1602 = vsub.f32 %v56, %v1569
    %v1603 = vsub.f32 %v57, %v1569
    %v1604 = vsub.f32 %v58, %v1569
    %v1605 = vsub.f32 %v59, %v1569
    %v1606 = vsub.f32 %v60, %v1569
    %v1607 = vsub.f32 %v61, %v1569
    %v1608 = vsub.f32 %v62, %v1569
    %v1609 = vsub.f32 %v63, %v1569
    %v1610 = vsub.f32 %v64, %v1569
    %v1611 = vsub.f32 %v65, %v1569
    %v1612 = vsub.f32 %v66, %v1569
    %v1613 = vsub.f32 %v67, %v1569
    %v1614 = vsub.f32 %v68, %v1569
    %v1615 = vsub.f32 %v69, %v1569
    %v1616 = vsub.f32 %v70, %v1569
    %v1617 = vsub.f32 %v71, %v1569
    %v1618 = vsub.f32 %v72, %v1569
    %v1619 = vsub.f32 %v73, %v1569
    %v1620 = vsub.f32 %v74, %v1569
    %v1621 = vsub.f32 %v75, %v1569
    %v1622 = vsub.f32 %v76, %v1569
    %v1623 = vsub.f32 %v77, %v1569
    %v1624 = vsub.f32 %v78, %v1569
    %v1625 = vsub.f32 %v79, %v1569
    %v1626 = vsub.f32 %v80, %v1569
    %v1627 = vsub.f32 %v81, %v1569
    %v1628 = vsub.f32 %v82, %v1569
    %v1629 = vsub.f32 %v83, %v1569
    %v1630 = vsub.f32 %v84, %v1569
    %v1631 = vsub.f32 %v85, %v1569
    %v1632 = vsub.f32 %v86, %v1569
    %v1633 = vsub.f32 %v87, %v1569
    %v1634 = vsub.f32 %v88, %v1569
    %v1635 = vsub.f32 %v89, %v1569
    %v1636 = vsub.f32 %v90, %v1569
    %v1637 = vsub.f32 %v91, %v1569
    %v1638 = vsub.f32 %v92, %v1569
    %v1639 = vsub.f32 %v93, %v1569
    %v1640 = vsub.f32 %v94, %v1569
    %v1641 = vsub.f32 %v95, %v1569
    %v1642 = vsub.f32 %v96, %v1569
    %v1643 = vsub.f32 %v97, %v1569
    %v1644 = vsub.f32 %v98, %v1569
    %v1645 = vsub.f32 %v99, %v1569
    %v1646 = vsub.f32 %v100, %v1569
    %v1647 = vsub.f32 %v101, %v1569
    %v1648 = vsub.f32 %v102, %v1569
    %v1649 = vsub.f32 %v103, %v1569
    %v1650 = vsub.f32 %v104, %v1569
    %v1651 = vsub.f32 %v105, %v1569
    %v1652 = vsub.f32 %v106, %v1569
    %v1653 = vsub.f32 %v107, %v1569
    %v1654 = vsub.f32 %v108, %v1569
    %v1655 = vsub.f32 %v109, %v1569
    %v1656 = vsub.f32 %v110, %v1569
    %v1657 = vsub.f32 %v111, %v1569
    %v1658 = vsub.f32 %v112, %v1569
    %v1659 = vsub.f32 %v113, %v1569
    %v1660 = vsub.f32 %v114, %v1569
    %v1661 = vsub.f32 %v115, %v1569
    %v1662 = vsub.f32 %v116, %v1569
    %v1663 = vsub.f32 %v117, %v1569
    %v1664 = vsub.f32 %v118, %v1569
    %v1665 = vsub.f32 %v119, %v1569
    %v1666 = vsub.f32 %v120, %v1569
    %v1667 = vsub.f32 %v121, %v1569
    %v1668 = vsub.f32 %v122, %v1569
    %v1669 = vsub.f32 %v123, %v1569
    %v1670 = vsub.f32 %v124, %v1569
    %v1671 = vsub.f32 %v125, %v1569
    %v1672 = vsub.f32 %v126, %v1569
    %v1673 = vsub.f32 %v127, %v1569
    %v1674 = vsub.f32 %v128, %v1569
    %v1675 = vsub.f32 %v129, %v1569
    %v1676 = vsub.f32 %v130, %v1569
    %v1677 = vsub.f32 %v131, %v1569
    %v1678 = vsub.f32 %v132, %v1569
    %v1679 = vsub.f32 %v133, %v1569
    %v1680 = vsub.f32 %v134, %v1569
    %v1681 = vsub.f32 %v135, %v1569
    %v1682 = vsub.f32 %v136, %v1569
    %v1683 = vsub.f32 %v137, %v1569
    %v1684 = vsub.f32 %v138, %v1569
    %v1685 = vsub.f32 %v139, %v1569
    %v1686 = vsub.f32 %v140, %v1569
    %v1687 = vsub.f32 %v141, %v1569
    %v1688 = vsub.f32 %v142, %v1569
    %v1689 = vsub.f32 %v143, %v1569
    %v1690 = vsub.f32 %v144, %v1569
    %v1691 = vsub.f32 %v145, %v1569
    %v1692 = vsub.f32 %v146, %v1569
    %v1693 = vsub.f32 %v147, %v1569
    %v1694 = vsub.f32 %v148, %v1569
    %v1695 = vsub.f32 %v149, %v1569
    %v1696 = vsub.f32 %v150, %v1569
    %v1697 = vsub.f32 %v151, %v1569
    %v1698 = vsub.f32 %v152, %v1569
    %v1699 = vsub.f32 %v153, %v1570
    %v1700 = vsub.f32 %v154, %v1570
    %v1701 = vsub.f32 %v155, %v1570
    %v1702 = vsub.f32 %v156, %v1570
    %v1703 = vsub.f32 %v157, %v1570
    %v1704 = vsub.f32 %v158, %v1570
    %v1705 = vsub.f32 %v159, %v1570
    %v1706 = vsub.f32 %v160, %v1570
    %v1707 = vsub.f32 %v161, %v1570
    %v1708 = vsub.f32 %v162, %v1570
    %v1709 = vsub.f32 %v163, %v1570
    %v1710 = vsub.f32 %v164, %v1570
    %v1711 = vsub.f32 %v165, %v1570
    %v1712 = vsub.f32 %v166, %v1570
    %v1713 = vsub.f32 %v167, %v1570
    %v1714 = vsub.f32 %v168, %v1570
    %v1715 = vsub.f32 %v169, %v1570
    %v1716 = vsub.f32 %v170, %v1570
    %v1717 = vsub.f32 %v171, %v1570
    %v1718 = vsub.f32 %v172, %v1570
    %v1719 = vsub.f32 %v173, %v1570
    %v1720 = vsub.f32 %v174, %v1570
    %v1721 = vsub.f32 %v175, %v1570
    %v1722 = vsub.f32 %v176, %v1570
    %v1723 = vsub.f32 %v177, %v1570
    %v1724 = vsub.f32 %v178, %v1570
    %v1725 = vsub.f32 %v179, %v1570
    %v1726 = vsub.f32 %v180, %v1570
    %v1727 = vsub.f32 %v181, %v1570
    %v1728 = vsub.f32 %v182, %v1570
    %v1729 = vsub.f32 %v183, %v1570
    %v1730 = vsub.f32 %v184, %v1570
    %v1731 = vsub.f32 %v185, %v1570
    %v1732 = vsub.f32 %v186, %v1570
    %v1733 = vsub.f32 %v187, %v1570
    %v1734 = vsub.f32 %v188, %v1570
    %v1735 = vsub.f32 %v189, %v1570
    %v1736 = vsub.f32 %v190, %v1570
    %v1737 = vsub.f32 %v191, %v1570
    %v1738 = vsub.f32 %v192, %v1570
    %v1739 = vsub.f32 %v193, %v1570
    %v1740 = vsub.f32 %v194, %v1570
    %v1741 = vsub.f32 %v195, %v1570
    %v1742 = vsub.f32 %v196, %v1570
    %v1743 = vsub.f32 %v197, %v1570
    %v1744 = vsub.f32 %v198, %v1570
    %v1745 = vsub.f32 %v199, %v1570
    %v1746 = vsub.f32 %v200, %v1570
    %v1747 = vsub.f32 %v201, %v1570
    %v1748 = vsub.f32 %v202, %v1570
    %v1749 = vsub.f32 %v203, %v1570
    %v1750 = vsub.f32 %v204, %v1570
    %v1751 = vsub.f32 %v205, %v1570
    %v1752 = vsub.f32 %v206, %v1570
    %v1753 = vsub.f32 %v207, %v1570
    %v1754 = vsub.f32 %v208, %v1570
    %v1755 = vsub.f32 %v209, %v1570
    %v1756 = vsub.f32 %v210, %v1570
    %v1757 = vsub.f32 %v211, %v1570
    %v1758 = vsub.f32 %v212, %v1570
    %v1759 = vsub.f32 %v213, %v1570
    %v1760 = vsub.f32 %v214, %v1570
    %v1761 = vsub.f32 %v215, %v1570
    %v1762 = vsub.f32 %v216, %v1570
    %v1763 = vsub.f32 %v217, %v1570
    %v1764 = vsub.f32 %v218, %v1570
    %v1765 = vsub.f32 %v219, %v1570
    %v1766 = vsub.f32 %v220, %v1570
    %v1767 = vsub.f32 %v221, %v1570
    %v1768 = vsub.f32 %v222, %v1570
    %v1769 = vsub.f32 %v223, %v1570
    %v1770 = vsub.f32 %v224, %v1570
    %v1771 = vsub.f32 %v225, %v1570
    %v1772 = vsub.f32 %v226, %v1570
    %v1773 = vsub.f32 %v227, %v1570
    %v1774 = vsub.f32 %v228, %v1570
    %v1775 = vsub.f32 %v229, %v1570
    %v1776 = vsub.f32 %v230, %v1570
    %v1777 = vsub.f32 %v231, %v1570
    %v1778 = vsub.f32 %v232, %v1570
    %v1779 = vsub.f32 %v233, %v1570
    %v1780 = vsub.f32 %v234, %v1570
    %v1781 = vsub.f32 %v235, %v1570
    %v1782 = vsub.f32 %v236, %v1570
    %v1783 = vsub.f32 %v237, %v1570
    %v1784 = vsub.f32 %v238, %v1570
    %v1785 = vsub.f32 %v239, %v1570
    %v1786 = vsub.f32 %v240, %v1570
    %v1787 = vsub.f32 %v241, %v1570
    %v1788 = vsub.f32 %v242, %v1570
    %v1789 = vsub.f32 %v243, %v1570
    %v1790 = vsub.f32 %v244, %v1570
    %v1791 = vsub.f32 %v245, %v1570
    %v1792 = vsub.f32 %v246, %v1570
    %v1793 = vsub.f32 %v247, %v1570
    %v1794 = vsub.f32 %v248, %v1570
    %v1795 = vsub.f32 %v249, %v1570
    %v1796 = vsub.f32 %v250, %v1570
    %v1797 = vsub.f32 %v251, %v1570
    %v1798 = vsub.f32 %v252, %v1570
    %v1799 = vsub.f32 %v253, %v1570
    %v1800 = vsub.f32 %v254, %v1570
    %v1801 = vsub.f32 %v255, %v1570
    %v1802 = vsub.f32 %v256, %v1570
    %v1803 = vsub.f32 %v257, %v1570
    %v1804 = vsub.f32 %v258, %v1570
    %v1805 = vsub.f32 %v259, %v1570
    %v1806 = vsub.f32 %v260, %v1570
    %v1807 = vsub.f32 %v261, %v1570
    %v1808 = vsub.f32 %v262, %v1570
    %v1809 = vsub.f32 %v263, %v1570
    %v1810 = vsub.f32 %v264, %v1570
    %v1811 = vsub.f32 %v265, %v1570
    %v1812 = vsub.f32 %v266, %v1570
    %v1813 = vsub.f32 %v267, %v1570
    %v1814 = vsub.f32 %v268, %v1570
    %v1815 = vsub.f32 %v269, %v1570
    %v1816 = vsub.f32 %v270, %v1570
    %v1817 = vsub.f32 %v271, %v1570
    %v1818 = vsub.f32 %v272, %v1570
    %v1819 = vsub.f32 %v273, %v1570
    %v1820 = vsub.f32 %v274, %v1570
    %v1821 = vsub.f32 %v275, %v1570
    %v1822 = vsub.f32 %v276, %v1570
    %v1823 = vsub.f32 %v277, %v1570
    %v1824 = vsub.f32 %v278, %v1570
    %v1825 = vsub.f32 %v279, %v1570
    %v1826 = vsub.f32 %v280, %v1570
    %1827 = vst [vmem:[#allocation5] sm:$0xff] %v1571
    %1828 = vst [vmem:[#allocation5 + $0x8] sm:$0xff] %v1572
    %1829 = vst [vmem:[#allocation5 + $0x10] sm:$0xff] %v1573
    %1830 = vst [vmem:[#allocation5 + $0x18] sm:$0xff] %v1574
    %1831 = vst [vmem:[#allocation5 + $0x20] sm:$0xff] %v1575
    %1832 = vst [vmem:[#allocation5 + $0x28] sm:$0xff] %v1576
    %1833 = vst [vmem:[#allocation5 + $0x30] sm:$0xff] %v1577
    %1834 = vst [vmem:[#allocation5 + $0x38] sm:$0xff] %v1578
    %1835 = vst [vmem:[#allocation5 + $0x40] sm:$0xff] %v1579
    %1836 = vst [vmem:[#allocation5 + $0x48] sm:$0xff] %v1580
    %1837 = vst [vmem:[#allocation5 + $0x50] sm:$0xff] %v1581
    %1838 = vst [vmem:[#allocation5 + $0x58] sm:$0xff] %v1582
    %1839 = vst [vmem:[#allocation5 + $0x60] sm:$0xff] %v1583
    %1840 = vst [vmem:[#allocation5 + $0x68] sm:$0xff] %v1584
    %1841 = vst [vmem:[#allocation5 + $0x70] sm:$0xff] %v1585
    %1842 = vst [vmem:[#allocation5 + $0x78] sm:$0xff] %v1586
    %1843 = vst [vmem:[#allocation5 + $0x80] sm:$0xff] %v1587
    %1844 = vst [vmem:[#allocation5 + $0x88] sm:$0xff] %v1588
    %1845 = vst [vmem:[#allocation5 + $0x90] sm:$0xff] %v1589
    %1846 = vst [vmem:[#allocation5 + $0x98] sm:$0xff] %v1590
    %1847 = vst [vmem:[#allocation5 + $0xa0] sm:$0xff] %v1591
    %1848 = vst [vmem:[#allocation5 + $0xa8] sm:$0xff] %v1592
    %1849 = vst [vmem:[#allocation5 + $0xb0] sm:$0xff] %v1593
    %1850 = vst [vmem:[#allocation5 + $0xb8] sm:$0xff] %v1594
    %1851 = vst [vmem:[#allocation5 + $0xc0] sm:$0xff] %v1595
    %1852 = vst [vmem:[#allocation5 + $0xc8] sm:$0xff] %v1596
    %1853 = vst [vmem:[#allocation5 + $0xd0] sm:$0xff] %v1597
    %1854 = vst [vmem:[#allocation5 + $0xd8] sm:$0xff] %v1598
    %1855 = vst [vmem:[#allocation5 + $0xe0] sm:$0xff] %v1599
    %1856 = vst [vmem:[#allocation5 + $0xe8] sm:$0xff] %v1600
    %1857 = vst [vmem:[#allocation5 + $0xf0] sm:$0xff] %v1601
    %1858 = vst [vmem:[#allocation5 + $0xf8] sm:$0xff] %v1602
    %1859 = vst [vmem:[#allocation5 + $0x100] sm:$0xff] %v1603
    %1860 = vst [vmem:[#allocation5 + $0x108] sm:$0xff] %v1604
    %1861 = vst [vmem:[#allocation5 + $0x110] sm:$0xff] %v1605
    %1862 = vst [vmem:[#allocation5 + $0x118] sm:$0xff] %v1606
    %1863 = vst [vmem:[#allocation5 + $0x120] sm:$0xff] %v1607
    %1864 = vst [vmem:[#allocation5 + $0x128] sm:$0xff] %v1608
    %1865 = vst [vmem:[#allocation5 + $0x130] sm:$0xff] %v1609
    %1866 = vst [vmem:[#allocation5 + $0x138] sm:$0xff] %v1610
    %1867 = vst [vmem:[#allocation5 + $0x140] sm:$0xff] %v1611
    %1868 = vst [vmem:[#allocation5 + $0x148] sm:$0xff] %v1612
    %1869 = vst [vmem:[#allocation5 + $0x150] sm:$0xff] %v1613
    %1870 = vst [vmem:[#allocation5 + $0x158] sm:$0xff] %v1614
    %1871 = vst [vmem:[#allocation5 + $0x160] sm:$0xff] %v1615
    %1872 = vst [vmem:[#allocation5 + $0x168] sm:$0xff] %v1616
    %1873 = vst [vmem:[#allocation5 + $0x170] sm:$0xff] %v1617
    %1874 = vst [vmem:[#allocation5 + $0x178] sm:$0xff] %v1618
    %1875 = vst [vmem:[#allocation5 + $0x180] sm:$0xff] %v1619
    %1876 = vst [vmem:[#allocation5 + $0x188] sm:$0xff] %v1620
    %1877 = vst [vmem:[#allocation5 + $0x190] sm:$0xff] %v1621
    %1878 = vst [vmem:[#allocation5 + $0x198] sm:$0xff] %v1622
    %1879 = vst [vmem:[#allocation5 + $0x1a0] sm:$0xff] %v1623
    %1880 = vst [vmem:[#allocation5 + $0x1a8] sm:$0xff] %v1624
    %1881 = vst [vmem:[#allocation5 + $0x1b0] sm:$0xff] %v1625
    %1882 = vst [vmem:[#allocation5 + $0x1b8] sm:$0xff] %v1626
    %1883 = vst [vmem:[#allocation5 + $0x1c0] sm:$0xff] %v1627
    %1884 = vst [vmem:[#allocation5 + $0x1c8] sm:$0xff] %v1628
    %1885 = vst [vmem:[#allocation5 + $0x1d0] sm:$0xff] %v1629
    %1886 = vst [vmem:[#allocation5 + $0x1d8] sm:$0xff] %v1630
    %1887 = vst [vmem:[#allocation5 + $0x1e0] sm:$0xff] %v1631
    %1888 = vst [vmem:[#allocation5 + $0x1e8] sm:$0xff] %v1632
    %1889 = vst [vmem:[#allocation5 + $0x1f0] sm:$0xff] %v1633
    %1890 = vst [vmem:[#allocation5 + $0x1f8] sm:$0xff] %v1634
    %1891 = vst [vmem:[#allocation5 + $0x200] sm:$0xff] %v1635
    %1892 = vst [vmem:[#allocation5 + $0x208] sm:$0xff] %v1636
    %1893 = vst [vmem:[#allocation5 + $0x210] sm:$0xff] %v1637
    %1894 = vst [vmem:[#allocation5 + $0x218] sm:$0xff] %v1638
    %1895 = vst [vmem:[#allocation5 + $0x220] sm:$0xff] %v1639
    %1896 = vst [vmem:[#allocation5 + $0x228] sm:$0xff] %v1640
    %1897 = vst [vmem:[#allocation5 + $0x230] sm:$0xff] %v1641
    %1898 = vst [vmem:[#allocation5 + $0x238] sm:$0xff] %v1642
    %1899 = vst [vmem:[#allocation5 + $0x240] sm:$0xff] %v1643
    %1900 = vst [vmem:[#allocation5 + $0x248] sm:$0xff] %v1644
    %1901 = vst [vmem:[#allocation5 + $0x250] sm:$0xff] %v1645
    %1902 = vst [vmem:[#allocation5 + $0x258] sm:$0xff] %v1646
    %1903 = vst [vmem:[#allocation5 + $0x260] sm:$0xff] %v1647
    %1904 = vst [vmem:[#allocation5 + $0x268] sm:$0xff] %v1648
    %1905 = vst [vmem:[#allocation5 + $0x270] sm:$0xff] %v1649
    %1906 = vst [vmem:[#allocation5 + $0x278] sm:$0xff] %v1650
    %1907 = vst [vmem:[#allocation5 + $0x280] sm:$0xff] %v1651
    %1908 = vst [vmem:[#allocation5 + $0x288] sm:$0xff] %v1652
    %1909 = vst [vmem:[#allocation5 + $0x290] sm:$0xff] %v1653
    %1910 = vst [vmem:[#allocation5 + $0x298] sm:$0xff] %v1654
    %1911 = vst [vmem:[#allocation5 + $0x2a0] sm:$0xff] %v1655
    %1912 = vst [vmem:[#allocation5 + $0x2a8] sm:$0xff] %v1656
    %1913 = vst [vmem:[#allocation5 + $0x2b0] sm:$0xff] %v1657
    %1914 = vst [vmem:[#allocation5 + $0x2b8] sm:$0xff] %v1658
    %1915 = vst [vmem:[#allocation5 + $0x2c0] sm:$0xff] %v1659
    %1916 = vst [vmem:[#allocation5 + $0x2c8] sm:$0xff] %v1660
    %1917 = vst [vmem:[#allocation5 + $0x2d0] sm:$0xff] %v1661
    %1918 = vst [vmem:[#allocation5 + $0x2d8] sm:$0xff] %v1662
    %1919 = vst [vmem:[#allocation5 + $0x2e0] sm:$0xff] %v1663
    %1920 = vst [vmem:[#allocation5 + $0x2e8] sm:$0xff] %v1664
    %1921 = vst [vmem:[#allocation5 + $0x2f0] sm:$0xff] %v1665
    %1922 = vst [vmem:[#allocation5 + $0x2f8] sm:$0xff] %v1666
    %1923 = vst [vmem:[#allocation5 + $0x300] sm:$0xff] %v1667
    %1924 = vst [vmem:[#allocation5 + $0x308] sm:$0xff] %v1668
    %1925 = vst [vmem:[#allocation5 + $0x310] sm:$0xff] %v1669
    %1926 = vst [vmem:[#allocation5 + $0x318] sm:$0xff] %v1670
    %1927 = vst [vmem:[#allocation5 + $0x320] sm:$0xff] %v1671
    %1928 = vst [vmem:[#allocation5 + $0x328] sm:$0xff] %v1672
    %1929 = vst [vmem:[#allocation5 + $0x330] sm:$0xff] %v1673
    %1930 = vst [vmem:[#allocation5 + $0x338] sm:$0xff] %v1674
    %1931 = vst [vmem:[#allocation5 + $0x340] sm:$0xff] %v1675
    %1932 = vst [vmem:[#allocation5 + $0x348] sm:$0xff] %v1676
    %1933 = vst [vmem:[#allocation5 + $0x350] sm:$0xff] %v1677
    %1934 = vst [vmem:[#allocation5 + $0x358] sm:$0xff] %v1678
    %1935 = vst [vmem:[#allocation5 + $0x360] sm:$0xff] %v1679
    %1936 = vst [vmem:[#allocation5 + $0x368] sm:$0xff] %v1680
    %1937 = vst [vmem:[#allocation5 + $0x370] sm:$0xff] %v1681
    %1938 = vst [vmem:[#allocation5 + $0x378] sm:$0xff] %v1682
    %1939 = vst [vmem:[#allocation5 + $0x380] sm:$0xff] %v1683
    %1940 = vst [vmem:[#allocation5 + $0x388] sm:$0xff] %v1684
    %1941 = vst [vmem:[#allocation5 + $0x390] sm:$0xff] %v1685
    %1942 = vst [vmem:[#allocation5 + $0x398] sm:$0xff] %v1686
    %1943 = vst [vmem:[#allocation5 + $0x3a0] sm:$0xff] %v1687
    %1944 = vst [vmem:[#allocation5 + $0x3a8] sm:$0xff] %v1688
    %1945 = vst [vmem:[#allocation5 + $0x3b0] sm:$0xff] %v1689
    %1946 = vst [vmem:[#allocation5 + $0x3b8] sm:$0xff] %v1690
    %1947 = vst [vmem:[#allocation5 + $0x3c0] sm:$0xff] %v1691
    %1948 = vst [vmem:[#allocation5 + $0x3c8] sm:$0xff] %v1692
    %1949 = vst [vmem:[#allocation5 + $0x3d0] sm:$0xff] %v1693
    %1950 = vst [vmem:[#allocation5 + $0x3d8] sm:$0xff] %v1694
    %1951 = vst [vmem:[#allocation5 + $0x3e0] sm:$0xff] %v1695
    %1952 = vst [vmem:[#allocation5 + $0x3e8] sm:$0xff] %v1696
    %1953 = vst [vmem:[#allocation5 + $0x3f0] sm:$0xff] %v1697
    %1954 = vst [vmem:[#allocation5 + $0x3f8] sm:$0xff] %v1698
    %1955 = vst [vmem:[#allocation5 + $0x400] sm:$0xff] %v1699
    %1956 = vst [vmem:[#allocation5 + $0x408] sm:$0xff] %v1700
    %1957 = vst [vmem:[#allocation5 + $0x410] sm:$0xff] %v1701
    %1958 = vst [vmem:[#allocation5 + $0x418] sm:$0xff] %v1702
    %1959 = vst [vmem:[#allocation5 + $0x420] sm:$0xff] %v1703
    %1960 = vst [vmem:[#allocation5 + $0x428] sm:$0xff] %v1704
    %1961 = vst [vmem:[#allocation5 + $0x430] sm:$0xff] %v1705
    %1962 = vst [vmem:[#allocation5 + $0x438] sm:$0xff] %v1706
    %1963 = vst [vmem:[#allocation5 + $0x440] sm:$0xff] %v1707
    %1964 = vst [vmem:[#allocation5 + $0x448] sm:$0xff] %v1708
    %1965 = vst [vmem:[#allocation5 + $0x450] sm:$0xff] %v1709
    %1966 = vst [vmem:[#allocation5 + $0x458] sm:$0xff] %v1710
    %1967 = vst [vmem:[#allocation5 + $0x460] sm:$0xff] %v1711
    %1968 = vst [vmem:[#allocation5 + $0x468] sm:$0xff] %v1712
    %1969 = vst [vmem:[#allocation5 + $0x470] sm:$0xff] %v1713
    %1970 = vst [vmem:[#allocation5 + $0x478] sm:$0xff] %v1714
    %1971 = vst [vmem:[#allocation5 + $0x480] sm:$0xff] %v1715
    %1972 = vst [vmem:[#allocation5 + $0x488] sm:$0xff] %v1716
    %1973 = vst [vmem:[#allocation5 + $0x490] sm:$0xff] %v1717
    %1974 = vst [vmem:[#allocation5 + $0x498] sm:$0xff] %v1718
    %1975 = vst [vmem:[#allocation5 + $0x4a0] sm:$0xff] %v1719
    %1976 = vst [vmem:[#allocation5 + $0x4a8] sm:$0xff] %v1720
    %1977 = vst [vmem:[#allocation5 + $0x4b0] sm:$0xff] %v1721
    %1978 = vst [vmem:[#allocation5 + $0x4b8] sm:$0xff] %v1722
    %1979 = vst [vmem:[#allocation5 + $0x4c0] sm:$0xff] %v1723
    %1980 = vst [vmem:[#allocation5 + $0x4c8] sm:$0xff] %v1724
    %1981 = vst [vmem:[#allocation5 + $0x4d0] sm:$0xff] %v1725
    %1982 = vst [vmem:[#allocation5 + $0x4d8] sm:$0xff] %v1726
    %1983 = vst [vmem:[#allocation5 + $0x4e0] sm:$0xff] %v1727
    %1984 = vst [vmem:[#allocation5 + $0x4e8] sm:$0xff] %v1728
    %1985 = vst [vmem:[#allocation5 + $0x4f0] sm:$0xff] %v1729
    %1986 = vst [vmem:[#allocation5 + $0x4f8] sm:$0xff] %v1730
    %1987 = vst [vmem:[#allocation5 + $0x500] sm:$0xff] %v1731
    %1988 = vst [vmem:[#allocation5 + $0x508] sm:$0xff] %v1732
    %1989 = vst [vmem:[#allocation5 + $0x510] sm:$0xff] %v1733
    %1990 = vst [vmem:[#allocation5 + $0x518] sm:$0xff] %v1734
    %1991 = vst [vmem:[#allocation5 + $0x520] sm:$0xff] %v1735
    %1992 = vst [vmem:[#allocation5 + $0x528] sm:$0xff] %v1736
    %1993 = vst [vmem:[#allocation5 + $0x530] sm:$0xff] %v1737
    %1994 = vst [vmem:[#allocation5 + $0x538] sm:$0xff] %v1738
    %1995 = vst [vmem:[#allocation5 + $0x540] sm:$0xff] %v1739
    %1996 = vst [vmem:[#allocation5 + $0x548] sm:$0xff] %v1740
    %1997 = vst [vmem:[#allocation5 + $0x550] sm:$0xff] %v1741
    %1998 = vst [vmem:[#allocation5 + $0x558] sm:$0xff] %v1742
    %1999 = vst [vmem:[#allocation5 + $0x560] sm:$0xff] %v1743
    %2000 = vst [vmem:[#allocation5 + $0x568] sm:$0xff] %v1744
    %2001 = vst [vmem:[#allocation5 + $0x570] sm:$0xff] %v1745
    %2002 = vst [vmem:[#allocation5 + $0x578] sm:$0xff] %v1746
    %2003 = vst [vmem:[#allocation5 + $0x580] sm:$0xff] %v1747
    %2004 = vst [vmem:[#allocation5 + $0x588] sm:$0xff] %v1748
    %2005 = vst [vmem:[#allocation5 + $0x590] sm:$0xff] %v1749
    %2006 = vst [vmem:[#allocation5 + $0x598] sm:$0xff] %v1750
    %2007 = vst [vmem:[#allocation5 + $0x5a0] sm:$0xff] %v1751
    %2008 = vst [vmem:[#allocation5 + $0x5a8] sm:$0xff] %v1752
    %2009 = vst [vmem:[#allocation5 + $0x5b0] sm:$0xff] %v1753
    %2010 = vst [vmem:[#allocation5 + $0x5b8] sm:$0xff] %v1754
    %2011 = vst [vmem:[#allocation5 + $0x5c0] sm:$0xff] %v1755
    %2012 = vst [vmem:[#allocation5 + $0x5c8] sm:$0xff] %v1756
    %2013 = vst [vmem:[#allocation5 + $0x5d0] sm:$0xff] %v1757
    %2014 = vst [vmem:[#allocation5 + $0x5d8] sm:$0xff] %v1758
    %2015 = vst [vmem:[#allocation5 + $0x5e0] sm:$0xff] %v1759
    %2016 = vst [vmem:[#allocation5 + $0x5e8] sm:$0xff] %v1760
    %2017 = vst [vmem:[#allocation5 + $0x5f0] sm:$0xff] %v1761
    %2018 = vst [vmem:[#allocation5 + $0x5f8] sm:$0xff] %v1762
    %2019 = vst [vmem:[#allocation5 + $0x600] sm:$0xff] %v1763
    %2020 = vst [vmem:[#allocation5 + $0x608] sm:$0xff] %v1764
    %2021 = vst [vmem:[#allocation5 + $0x610] sm:$0xff] %v1765
    %2022 = vst [vmem:[#allocation5 + $0x618] sm:$0xff] %v1766
    %2023 = vst [vmem:[#allocation5 + $0x620] sm:$0xff] %v1767
    %2024 = vst [vmem:[#allocation5 + $0x628] sm:$0xff] %v1768
    %2025 = vst [vmem:[#allocation5 + $0x630] sm:$0xff] %v1769
    %2026 = vst [vmem:[#allocation5 + $0x638] sm:$0xff] %v1770
    %2027 = vst [vmem:[#allocation5 + $0x640] sm:$0xff] %v1771
    %2028 = vst [vmem:[#allocation5 + $0x648] sm:$0xff] %v1772
    %2029 = vst [vmem:[#allocation5 + $0x650] sm:$0xff] %v1773
    %2030 = vst [vmem:[#allocation5 + $0x658] sm:$0xff] %v1774
    %2031 = vst [vmem:[#allocation5 + $0x660] sm:$0xff] %v1775
    %2032 = vst [vmem:[#allocation5 + $0x668] sm:$0xff] %v1776
    %2033 = vst [vmem:[#allocation5 + $0x670] sm:$0xff] %v1777
    %2034 = vst [vmem:[#allocation5 + $0x678] sm:$0xff] %v1778
    %2035 = vst [vmem:[#allocation5 + $0x680] sm:$0xff] %v1779
    %2036 = vst [vmem:[#allocation5 + $0x688] sm:$0xff] %v1780
    %2037 = vst [vmem:[#allocation5 + $0x690] sm:$0xff] %v1781
    %2038 = vst [vmem:[#allocation5 + $0x698] sm:$0xff] %v1782
    %2039 = vst [vmem:[#allocation5 + $0x6a0] sm:$0xff] %v1783
    %2040 = vst [vmem:[#allocation5 + $0x6a8] sm:$0xff] %v1784
    %2041 = vst [vmem:[#allocation5 + $0x6b0] sm:$0xff] %v1785
    %2042 = vst [vmem:[#allocation5 + $0x6b8] sm:$0xff] %v1786
    %2043 = vst [vmem:[#allocation5 + $0x6c0] sm:$0xff] %v1787
    %2044 = vst [vmem:[#allocation5 + $0x6c8] sm:$0xff] %v1788
    %2045 = vst [vmem:[#allocation5 + $0x6d0] sm:$0xff] %v1789
    %2046 = vst [vmem:[#allocation5 + $0x6d8] sm:$0xff] %v1790
    %2047 = vst [vmem:[#allocation5 + $0x6e0] sm:$0xff] %v1791
    %2048 = vst [vmem:[#allocation5 + $0x6e8] sm:$0xff] %v1792
    %2049 = vst [vmem:[#allocation5 + $0x6f0] sm:$0xff] %v1793
    %2050 = vst [vmem:[#allocation5 + $0x6f8] sm:$0xff] %v1794
    %2051 = vst [vmem:[#allocation5 + $0x700] sm:$0xff] %v1795
    %2052 = vst [vmem:[#allocation5 + $0x708] sm:$0xff] %v1796
    %2053 = vst [vmem:[#allocation5 + $0x710] sm:$0xff] %v1797
    %2054 = vst [vmem:[#allocation5 + $0x718] sm:$0xff] %v1798
    %2055 = vst [vmem:[#allocation5 + $0x720] sm:$0xff] %v1799
    %2056 = vst [vmem:[#allocation5 + $0x728] sm:$0xff] %v1800
    %2057 = vst [vmem:[#allocation5 + $0x730] sm:$0xff] %v1801
    %2058 = vst [vmem:[#allocation5 + $0x738] sm:$0xff] %v1802
    %2059 = vst [vmem:[#allocation5 + $0x740] sm:$0xff] %v1803
    %2060 = vst [vmem:[#allocation5 + $0x748] sm:$0xff] %v1804
    %2061 = vst [vmem:[#allocation5 + $0x750] sm:$0xff] %v1805
    %2062 = vst [vmem:[#allocation5 + $0x758] sm:$0xff] %v1806
    %2063 = vst [vmem:[#allocation5 + $0x760] sm:$0xff] %v1807
    %2064 = vst [vmem:[#allocation5 + $0x768] sm:$0xff] %v1808
    %2065 = vst [vmem:[#allocation5 + $0x770] sm:$0xff] %v1809
    %2066 = vst [vmem:[#allocation5 + $0x778] sm:$0xff] %v1810
    %2067 = vst [vmem:[#allocation5 + $0x780] sm:$0xff] %v1811
    %2068 = vst [vmem:[#allocation5 + $0x788] sm:$0xff] %v1812
    %2069 = vst [vmem:[#allocation5 + $0x790] sm:$0xff] %v1813
    %2070 = vst [vmem:[#allocation5 + $0x798] sm:$0xff] %v1814
    %2071 = vst [vmem:[#allocation5 + $0x7a0] sm:$0xff] %v1815
    %2072 = vst [vmem:[#allocation5 + $0x7a8] sm:$0xff] %v1816
    %2073 = vst [vmem:[#allocation5 + $0x7b0] sm:$0xff] %v1817
    %2074 = vst [vmem:[#allocation5 + $0x7b8] sm:$0xff] %v1818
    %2075 = vst [vmem:[#allocation5 + $0x7c0] sm:$0xff] %v1819
    %2076 = vst [vmem:[#allocation5 + $0x7c8] sm:$0xff] %v1820
    %2077 = vst [vmem:[#allocation5 + $0x7d0] sm:$0xff] %v1821
    %2078 = vst [vmem:[#allocation5 + $0x7d8] sm:$0xff] %v1822
    %2079 = vst [vmem:[#allocation5 + $0x7e0] sm:$0xff] %v1823
    %2080 = vst [vmem:[#allocation5 + $0x7e8] sm:$0xff] %v1824
    %2081 = vst [vmem:[#allocation5 + $0x7f0] sm:$0xff] %v1825
    %2082 = vst [vmem:[#allocation5 + $0x7f8] sm:$0xff] %v1826
    // Predicated region
    $region10: #{tpu_custom_call.1} parent=1 // pred_check
      _
    $region11: #{tpu_custom_call.1} parent=1 // pred_check_branch
      %2084 = sbr.rel (0) target = $region13
    $region12: #{tpu_custom_call.1} parent=1 // pred_region
      %2086 = vsyncadd [#allocation4], 0
      %s2087 = sshll.u32 [#allocation5], 4
      %s2088 = int_to_ptr.vmem [resolvable:$true] %s2087
      %s2089 = sshll.u32 %s1, 4
      %s2090 = int_to_ptr.hbm [resolvable:$true] %s2089
      %2095 = dma.vmem_to_hbm [thread:$0]  %s2088, 32768, %s2090, [#allocation4], 16384, 16384, 1024
    $region13: #{tpu_custom_call.1} parent=1 // pred_fallthru
      _
    // Predicated region
    $region14: #{tpu_custom_call.1} parent=1 // pred_check
      _
    $region15: #{tpu_custom_call.1} parent=1 // pred_check_branch
      %2097 = sbr.rel (0) target = $region17
    $region16: #{tpu_custom_call.1} parent=1 // pred_region
      %2099 = dma.done [#allocation4], 32768
    $region17: #{tpu_custom_call.1} parent=1 // pred_fallthru
      _
    %2100 = vsyncpa [#allocation3], 1
    %2101 = vsyncpa [#allocation4], 1

</llo_original>
